<compile_context>
chip_gen: v6e
topology: v6e:2x2x1
jax: 0.10.0
libtpu: 0.0.40
codegen_flags: <defaults>
</compile_context>

<pallas_src>
import functools
import math

import jax
import jax.numpy as jnp
from jax import lax
from jax.experimental import pallas as pl
from jax.experimental.pallas import tpu as pltpu

NEG_SLOPE = 0.01  # nn.LeakyReLU() default negative_slope


def _downsample_kernel(xm_ref, xh_ref, w_ref, b_ref, o_ref):
    """LeakyReLU(conv3x3/s2) on one (TH output rows, full output width) tile.

    xm_ref : (TH, Wa, 4C) space-to-depth rows j*TH .. j*TH+TH-1 of one image
    xh_ref : (1,  Wa, 4C) halo row j*TH+TH (bottom taps of the tile's last row)
    w_ref  : (9C, C)      fused conv weight, (kh-major, kw, cin) rows x cout
    b_ref  : (1, C)       bias (f32)
    o_ref  : (TH, Wo, C)  output tile
    """
    TH = xm_ref.shape[0]
    Wo, C = o_ref.shape[-2], o_ref.shape[-1]

    xm = xm_ref[...]
    if TH > 1:
        # rows shifted down by one output row (uses the 1-row halo at the end)
        x_dn = jnp.concatenate([xm[1:], xh_ref[...]], axis=0)
    else:
        x_dn = xh_ref[...]

    # space-to-depth channel block = 2*row_parity + col_parity
    def tap(src, db, blk):
        return src[:, db:db + Wo, blk * C:(blk + 1) * C]

    taps = [
        tap(xm,   0, 0), tap(xm,   0, 1), tap(xm,   1, 0),   # kh=0, kw=0,1,2
        tap(xm,   0, 2), tap(xm,   0, 3), tap(xm,   1, 2),   # kh=1, kw=0,1,2
        tap(x_dn, 0, 0), tap(x_dn, 0, 1), tap(x_dn, 1, 0),   # kh=2, kw=0,1,2
    ]
    patches = jnp.concatenate(taps, axis=-1).reshape(TH * Wo, 9 * C)

    acc = jnp.dot(patches, w_ref[...], preferred_element_type=jnp.float32)
    acc = acc + b_ref[...].astype(jnp.float32)
    acc = jnp.where(acc >= 0, acc, NEG_SLOPE * acc)
    o_ref[...] = acc.reshape(TH, Wo, C).astype(o_ref.dtype)


def _cdiv(a, b):
    return -(-a // b)


def _round_up(x, m):
    return _cdiv(x, m) * m


def _vmem_capacity_bytes():
    try:
        return int(pltpu.get_tpu_info().vmem_capacity_bytes)
    except Exception:
        return 64 * 1024 * 1024  # v7x-safe fallback


def _pick_th(ho, wa, wo_pad, c, in_item, out_item, budget):
    """Largest output-row tile whose pipelined working set fits the budget."""
    fixed = 9 * c * c * in_item          # resident fused weight (1 buffer)
    fixed += 2 * c * 4                   # bias
    fixed += 2 * wa * 4 * c * in_item    # halo row (double-buffered)
    fixed += 2 * 1024 * 1024             # Mosaic internal scratch headroom
    per_row = (2 * wa * 4 * c * in_item      # main strip, double-buffered
               + 2 * wo_pad * c * out_item   # output tile, double-buffered
               + wo_pad * 9 * c * in_item    # in-VMEM patch tile
               + wo_pad * c * 4              # f32 accumulator
               + wa * 4 * c * in_item)       # shifted-row temp
    th = int((budget - fixed) // per_row)
    return max(1, min(th, ho))


def downsampling_forward_nhwc(x, weight, bias, *, compute_dtype=None,
                              single_buffer_params=True):
    """Conv2d(C, C, 3, stride=2, padding=1) + LeakyReLU.  NHWC in / NHWC out."""
    N, H, W, C = x.shape
    assert weight.shape == (C, C, 3, 3), weight.shape
    Ho = (H - 1) // 2 + 1
    Wo = (W - 1) // 2 + 1
    out_dtype = x.dtype
    cdt = jnp.dtype(out_dtype if compute_dtype is None else compute_dtype)
    in_item = cdt.itemsize
    out_item = jnp.dtype(out_dtype).itemsize

    Wo_pad = _round_up(Wo, 8)          # keeps in-kernel reshapes tile-aligned
    Wa = Wo_pad + 1                    # +1 column of halo for the kw=2 taps

    vmem_cap = _vmem_capacity_bytes()
    budget = vmem_cap // 2             # ~32 MiB on v7x, ~64 MiB on v5e/v6e
    th = _pick_th(Ho, Wa, Wo_pad, C, in_item, out_item, budget)
    n_ht = _cdiv(Ho, th)
    # v7x: nudge the total step count to be even so both TCs split evenly.
    if (N * n_ht) % 2 == 1 and Ho > 1 and n_ht < Ho:
        n_ht += 1
    th = _cdiv(Ho, n_ht)
    n_ht = _cdiv(Ho, th)
    Ho_pad = n_ht * th

    # One layout pass: conv padding (1 top/left, zeros bottom/right out to the
    # tile geometry) + space-to-depth.  Extra padded output rows/cols are
    # sliced off below.
    Hp = 2 * (Ho_pad + 1)
    Wp = 2 * (Wo_pad + 1)
    xp = jnp.pad(x, ((0, 0), (1, Hp - H - 1), (1, Wp - W - 1), (0, 0)))
    xs = xp.reshape(N, Ho_pad + 1, 2, Wo_pad + 1, 2, C)
    xs = xs.transpose(0, 1, 3, 2, 4, 5).reshape(N, Ho_pad + 1, Wo_pad + 1, 4 * C)
    xs = xs.astype(cdt)

    # PyTorch (O, I, kh, kw) -> fused (9*Cin, Cout): kh-major, kw, cin rows.
    w = jnp.transpose(weight, (2, 3, 1, 0)).reshape(9 * C, C).astype(cdt)
    b = bias.reshape(1, C).astype(jnp.float32)

    resident = {}
    if single_buffer_params:
        # Grid-invariant operands: one VMEM buffer is enough.
        resident = dict(pipeline_mode=pl.Buffered(1))

    out = pl.pallas_call(
        _downsample_kernel,
        out_shape=jax.ShapeDtypeStruct((N, Ho_pad, Wo_pad, C), out_dtype),
        grid=(N, n_ht),
        in_specs=[
            # main strip: TH space-to-depth rows of this image
            pl.BlockSpec((None, th, Wa, 4 * C), lambda n, j: (n, j, 0, 0)),
            # one-row halo just below the strip (block size 1 => element index)
            pl.BlockSpec((None, 1, Wa, 4 * C),
                         lambda n, j: (n, (j + 1) * th, 0, 0)),
            pl.BlockSpec((9 * C, C), lambda n, j: (0, 0), **resident),
            pl.BlockSpec((1, C), lambda n, j: (0, 0), **resident),
        ],
        out_specs=pl.BlockSpec((None, th, Wo_pad, C), lambda n, j: (n, j, 0, 0)),
        compiler_params=pltpu.CompilerParams(
            dimension_semantics=("parallel", "parallel"),
            vmem_limit_bytes=min(vmem_cap * 3 // 4, 112 * 1024 * 1024),
        ),
    )(xs, xs, w, b)

    return out[:, :Ho, :Wo, :]


def downsampling_forward(x_nchw, weight, bias, *, compute_dtype=None,
                         single_buffer_params=True):
    """NCHW-in / NCHW-out wrapper matching the PyTorch module.

    NOTE: each transpose is a full HBM pass; models that are already NHWC
    should call downsampling_forward_nhwc directly and skip both.
    """
    x = jnp.transpose(x_nchw, (0, 2, 3, 1))
    y = downsampling_forward_nhwc(x, weight, bias, compute_dtype=compute_dtype,
                                  single_buffer_params=single_buffer_params)
    return jnp.transpose(y, (0, 3, 1, 2))


if __name__ == "__main__":
    key = jax.random.PRNGKey(0)
    k_x, k_w, k_b = jax.random.split(key, 3)

    # C = 128 keeps every lane slice / store fully lane-dense (see header note).
    N, C, H, W = 2, 128, 16, 16
    x = jax.random.normal(k_x, (N, C, H, W), jnp.float32)

    fan_in = C * 3 * 3
    bound = 1.0 / math.sqrt(fan_in)
    weight = jax.random.uniform(k_w, (C, C, 3, 3), jnp.float32, -bound, bound)
    bias = jax.random.uniform(k_b, (C,), jnp.float32, -bound, bound)

    fwd = jax.jit(downsampling_forward)
    try:
        y = jax.block_until_ready(fwd(x, weight, bias))
    except Exception:
        # Fallback for JAX builds without pipeline_mode=pl.Buffered(1): same
        # kernel, default double-buffered resident weight/bias.
        fwd = jax.jit(functools.partial(downsampling_forward,
                                        single_buffer_params=False))
        y = jax.block_until_ready(fwd(x, weight, bias))

    # Pure-JAX reference.
    y_ref = lax.conv_general_dilated(
        x, weight, window_strides=(2, 2), padding=((1, 1), (1, 1)),
        dimension_numbers=("NCHW", "OIHW", "NCHW"))
    y_ref = y_ref + bias.reshape(1, C, 1, 1)
    y_ref = jnp.where(y_ref >= 0, y_ref, NEG_SLOPE * y_ref)

    assert y.shape == (N, C, H // 2, W // 2), y.shape
    # Tolerance covers possible bf16-input rounding differences between XLA's
    # conv path and the MXU path at K = 9*C; real layout/index bugs are O(1).
    assert jnp.allclose(y, y_ref, atol=2e-2, rtol=2e-2), float(
        jnp.max(jnp.abs(y - y_ref)))
    print("KERNEL_OK")
</pallas_src>

<mosaic_0001>
module attributes {stable_mosaic.version = 11 : i64} {
  func.func @_downsample_kernel(%arg0: i32, %arg1: i32, %arg2: memref<1x8x9x512xf32, #tpu.memory_space<vmem>>, %arg3: memref<1x1x9x512xf32, #tpu.memory_space<vmem>>, %arg4: memref<1152x128xf32, #tpu.memory_space<vmem>>, %arg5: memref<1x128xf32, #tpu.memory_space<vmem>>, %arg6: memref<1x8x8x128xf32, #tpu.memory_space<vmem>>) attributes {dimension_semantics = [#tpu.dimension_semantics<parallel>, #tpu.dimension_semantics<parallel>], iteration_bounds = array<i64: 2, 1>, scalar_prefetch = 0 : i64, scratch_operands = 0 : i64, tpu.core_type = #tpu.core_type<tc>, window_params = [{transform_indices = @transform_0, window_bounds = array<i64: 1, 8, 9, 512>}, {transform_indices = @transform_1, window_bounds = array<i64: 1, 1, 9, 512>}, {pipeline_mode = #tpu.pipeline_mode<synchronous>, transform_indices = @transform_2, window_bounds = array<i64: 1152, 128>}, {pipeline_mode = #tpu.pipeline_mode<synchronous>, transform_indices = @transform_3, window_bounds = array<i64: 1, 128>}, {transform_indices = @transform_4, window_bounds = array<i64: 1, 8, 8, 128>}]} {
    %c0 = arith.constant 0 : index
    %c0_0 = arith.constant 0 : index
    %c0_1 = arith.constant 0 : index
    %c0_2 = arith.constant 0 : index
    %0 = vector.load %arg2[%c0, %c0_0, %c0_1, %c0_2] : memref<1x8x9x512xf32, #tpu.memory_space<vmem>>, vector<1x8x9x512xf32>
    %1 = vector.shape_cast %0 : vector<1x8x9x512xf32> to vector<8x9x512xf32>
    %2 = vector.extract_strided_slice %1 {offsets = [1, 0, 0], sizes = [7, 9, 512], strides = [1, 1, 1]} : vector<8x9x512xf32> to vector<7x9x512xf32>
    %c0_3 = arith.constant 0 : index
    %c0_4 = arith.constant 0 : index
    %c0_5 = arith.constant 0 : index
    %c0_6 = arith.constant 0 : index
    %3 = vector.load %arg3[%c0_3, %c0_4, %c0_5, %c0_6] : memref<1x1x9x512xf32, #tpu.memory_space<vmem>>, vector<1x1x9x512xf32>
    %4 = vector.shape_cast %3 : vector<1x1x9x512xf32> to vector<1x9x512xf32>
    %5 = tpu.concatenate %2, %4 in 0 : vector<7x9x512xf32>, vector<1x9x512xf32> -> vector<8x9x512xf32>
    %6 = vector.extract_strided_slice %1 {offsets = [0, 0, 0], sizes = [8, 8, 128], strides = [1, 1, 1]} : vector<8x9x512xf32> to vector<8x8x128xf32>
    %7 = vector.extract_strided_slice %1 {offsets = [0, 0, 128], sizes = [8, 8, 128], strides = [1, 1, 1]} : vector<8x9x512xf32> to vector<8x8x128xf32>
    %8 = vector.extract_strided_slice %1 {offsets = [0, 1, 0], sizes = [8, 8, 128], strides = [1, 1, 1]} : vector<8x9x512xf32> to vector<8x8x128xf32>
    %9 = vector.extract_strided_slice %1 {offsets = [0, 0, 256], sizes = [8, 8, 128], strides = [1, 1, 1]} : vector<8x9x512xf32> to vector<8x8x128xf32>
    %10 = vector.extract_strided_slice %1 {offsets = [0, 0, 384], sizes = [8, 8, 128], strides = [1, 1, 1]} : vector<8x9x512xf32> to vector<8x8x128xf32>
    %11 = vector.extract_strided_slice %1 {offsets = [0, 1, 256], sizes = [8, 8, 128], strides = [1, 1, 1]} : vector<8x9x512xf32> to vector<8x8x128xf32>
    %12 = vector.extract_strided_slice %5 {offsets = [0, 0, 0], sizes = [8, 8, 128], strides = [1, 1, 1]} : vector<8x9x512xf32> to vector<8x8x128xf32>
    %13 = vector.extract_strided_slice %5 {offsets = [0, 0, 128], sizes = [8, 8, 128], strides = [1, 1, 1]} : vector<8x9x512xf32> to vector<8x8x128xf32>
    %14 = vector.extract_strided_slice %5 {offsets = [0, 1, 0], sizes = [8, 8, 128], strides = [1, 1, 1]} : vector<8x9x512xf32> to vector<8x8x128xf32>
    %15 = tpu.concatenate %6, %7, %8, %9, %10, %11, %12, %13, %14 in 2 : vector<8x8x128xf32>, vector<8x8x128xf32>, vector<8x8x128xf32>, vector<8x8x128xf32>, vector<8x8x128xf32>, vector<8x8x128xf32>, vector<8x8x128xf32>, vector<8x8x128xf32>, vector<8x8x128xf32> -> vector<8x8x1152xf32>
    %16 = vector.shape_cast %15 : vector<8x8x1152xf32> to vector<64x1152xf32>
    %c0_7 = arith.constant 0 : index
    %c0_8 = arith.constant 0 : index
    %17 = vector.load %arg4[%c0_7, %c0_8] : memref<1152x128xf32, #tpu.memory_space<vmem>>, vector<1152x128xf32>
    %cst = arith.constant dense<0.000000e+00> : vector<64x128xf32>
    %18 = tpu.matmul %16, %17, %cst {dimension_numbers = #tpu.dot_dimension_numbers<[1], [0], [0], [1], [0, 0, 1, 1], [], []>} : vector<64x1152xf32>, vector<1152x128xf32>, vector<64x128xf32> -> vector<64x128xf32>
    %c0_9 = arith.constant 0 : index
    %c0_10 = arith.constant 0 : index
    %19 = vector.load %arg5[%c0_9, %c0_10] : memref<1x128xf32, #tpu.memory_space<vmem>>, vector<1x128xf32>
    %20 = vector.broadcast %19 : vector<1x128xf32> to vector<64x128xf32>
    %21 = arith.addf %18, %20 : vector<64x128xf32>
    %cst_11 = arith.constant 0.000000e+00 : f32
    %22 = vector.broadcast %cst_11 : f32 to vector<64x128xf32>
    %23 = arith.cmpf oge, %21, %22 : vector<64x128xf32>
    %cst_12 = arith.constant 0.00999999977 : f32
    %24 = vector.broadcast %cst_12 : f32 to vector<64x128xf32>
    %25 = arith.mulf %24, %21 : vector<64x128xf32>
    %26 = arith.select %23, %21, %25 : vector<64x128xi1>, vector<64x128xf32>
    %27 = vector.shape_cast %26 : vector<64x128xf32> to vector<8x8x128xf32>
    %c0_13 = arith.constant 0 : index
    %c0_14 = arith.constant 0 : index
    %c0_15 = arith.constant 0 : index
    %c0_16 = arith.constant 0 : index
    %28 = vector.load %arg6[%c0_13, %c0_14, %c0_15, %c0_16] : memref<1x8x8x128xf32, #tpu.memory_space<vmem>>, vector<1x8x8x128xf32>
    %29 = vector.shape_cast %28 : vector<1x8x8x128xf32> to vector<8x8x128xf32>
    %30 = vector.shape_cast %27 : vector<8x8x128xf32> to vector<1x8x8x128xf32>
    tpu.vector_store %arg6[%c0_13, %c0_14, %c0_15, %c0_16], %30 {strides = array<i32>} : memref<1x8x8x128xf32, #tpu.memory_space<vmem>>, vector<1x8x8x128xf32>,
    return
  }
  func.func @transform_0(%arg0: i32, %arg1: i32) -> (i32, i32, i32, i32) {
    %c0_i32 = arith.constant 0 : i32
    %c0_i32_0 = arith.constant 0 : i32
    %c0_i32_1 = arith.constant 0 : i32
    return %arg0, %arg1, %c0_i32, %c0_i32_0 : i32, i32, i32, i32
  }
  func.func @transform_1(%arg0: i32, %arg1: i32) -> (i32, i32, i32, i32) {
    %c1_i32 = arith.constant 1 : i32
    %0 = arith.addi %arg1, %c1_i32 : i32
    %c8_i32 = arith.constant 8 : i32
    %1 = arith.muli %0, %c8_i32 : i32
    %c0_i32 = arith.constant 0 : i32
    %c0_i32_0 = arith.constant 0 : i32
    %c0_i32_1 = arith.constant 0 : i32
    return %arg0, %1, %c0_i32, %c0_i32_0 : i32, i32, i32, i32
  }
  func.func @transform_2(%arg0: i32, %arg1: i32) -> (i32, i32) {
    %c0_i32 = arith.constant 0 : i32
    %c0_i32_0 = arith.constant 0 : i32
    %c0_i32_1 = arith.constant 0 : i32
    return %c0_i32, %c0_i32_0 : i32, i32
  }
  func.func @transform_3(%arg0: i32, %arg1: i32) -> (i32, i32) {
    %c0_i32 = arith.constant 0 : i32
    %c0_i32_0 = arith.constant 0 : i32
    %c0_i32_1 = arith.constant 0 : i32
    return %c0_i32, %c0_i32_0 : i32, i32
  }
  func.func @transform_4(%arg0: i32, %arg1: i32) -> (i32, i32, i32, i32) {
    %c0_i32 = arith.constant 0 : i32
    %c0_i32_0 = arith.constant 0 : i32
    %c0_i32_1 = arith.constant 0 : i32
    return %arg0, %arg1, %c0_i32, %c0_i32_0 : i32, i32, i32, i32
  }
}

module attributes {stable_mosaic.version = 11 : i64} {
  func.func @_downsample_kernel(%arg0: i32, %arg1: i32, %arg2: memref<1x8x9x512xf32, #tpu.memory_space<vmem>>, %arg3: memref<1x1x9x512xf32, #tpu.memory_space<vmem>>, %arg4: memref<1152x128xf32, #tpu.memory_space<vmem>>, %arg5: memref<1x128xf32, #tpu.memory_space<vmem>>, %arg6: memref<1x8x8x128xf32, #tpu.memory_space<vmem>>) attributes {dimension_semantics = [#tpu.dimension_semantics<parallel>, #tpu.dimension_semantics<parallel>], iteration_bounds = array<i64: 2, 1>, scalar_prefetch = 0 : i64, scratch_operands = 0 : i64, tpu.core_type = #tpu.core_type<tc>, window_params = [{transform_indices = @transform_0, window_bounds = array<i64: 1, 8, 9, 512>}, {transform_indices = @transform_1, window_bounds = array<i64: 1, 1, 9, 512>}, {pipeline_mode = #tpu.pipeline_mode<synchronous>, transform_indices = @transform_2, window_bounds = array<i64: 1152, 128>}, {pipeline_mode = #tpu.pipeline_mode<synchronous>, transform_indices = @transform_3, window_bounds = array<i64: 1, 128>}, {transform_indices = @transform_4, window_bounds = array<i64: 1, 8, 8, 128>}]} {
    %c0 = arith.constant 0 : index
    %c0_0 = arith.constant 0 : index
    %c0_1 = arith.constant 0 : index
    %c0_2 = arith.constant 0 : index
    %0 = vector.load %arg2[%c0, %c0_0, %c0_1, %c0_2] : memref<1x8x9x512xf32, #tpu.memory_space<vmem>>, vector<1x8x9x512xf32>
    %1 = vector.shape_cast %0 : vector<1x8x9x512xf32> to vector<8x9x512xf32>
    %2 = vector.extract_strided_slice %1 {offsets = [1, 0, 0], sizes = [7, 9, 512], strides = [1, 1, 1]} : vector<8x9x512xf32> to vector<7x9x512xf32>
    %c0_3 = arith.constant 0 : index
    %c0_4 = arith.constant 0 : index
    %c0_5 = arith.constant 0 : index
    %c0_6 = arith.constant 0 : index
    %3 = vector.load %arg3[%c0_3, %c0_4, %c0_5, %c0_6] : memref<1x1x9x512xf32, #tpu.memory_space<vmem>>, vector<1x1x9x512xf32>
    %4 = vector.shape_cast %3 : vector<1x1x9x512xf32> to vector<1x9x512xf32>
    %5 = tpu.concatenate %2, %4 in 0 : vector<7x9x512xf32>, vector<1x9x512xf32> -> vector<8x9x512xf32>
    %6 = vector.extract_strided_slice %1 {offsets = [0, 0, 0], sizes = [8, 8, 128], strides = [1, 1, 1]} : vector<8x9x512xf32> to vector<8x8x128xf32>
    %7 = vector.extract_strided_slice %1 {offsets = [0, 0, 128], sizes = [8, 8, 128], strides = [1, 1, 1]} : vector<8x9x512xf32> to vector<8x8x128xf32>
    %8 = vector.extract_strided_slice %1 {offsets = [0, 1, 0], sizes = [8, 8, 128], strides = [1, 1, 1]} : vector<8x9x512xf32> to vector<8x8x128xf32>
    %9 = vector.extract_strided_slice %1 {offsets = [0, 0, 256], sizes = [8, 8, 128], strides = [1, 1, 1]} : vector<8x9x512xf32> to vector<8x8x128xf32>
    %10 = vector.extract_strided_slice %1 {offsets = [0, 0, 384], sizes = [8, 8, 128], strides = [1, 1, 1]} : vector<8x9x512xf32> to vector<8x8x128xf32>
    %11 = vector.extract_strided_slice %1 {offsets = [0, 1, 256], sizes = [8, 8, 128], strides = [1, 1, 1]} : vector<8x9x512xf32> to vector<8x8x128xf32>
    %12 = vector.extract_strided_slice %5 {offsets = [0, 0, 0], sizes = [8, 8, 128], strides = [1, 1, 1]} : vector<8x9x512xf32> to vector<8x8x128xf32>
    %13 = vector.extract_strided_slice %5 {offsets = [0, 0, 128], sizes = [8, 8, 128], strides = [1, 1, 1]} : vector<8x9x512xf32> to vector<8x8x128xf32>
    %14 = vector.extract_strided_slice %5 {offsets = [0, 1, 0], sizes = [8, 8, 128], strides = [1, 1, 1]} : vector<8x9x512xf32> to vector<8x8x128xf32>
    %15 = tpu.concatenate %6, %7, %8, %9, %10, %11, %12, %13, %14 in 2 : vector<8x8x128xf32>, vector<8x8x128xf32>, vector<8x8x128xf32>, vector<8x8x128xf32>, vector<8x8x128xf32>, vector<8x8x128xf32>, vector<8x8x128xf32>, vector<8x8x128xf32>, vector<8x8x128xf32> -> vector<8x8x1152xf32>
    %16 = vector.shape_cast %15 : vector<8x8x1152xf32> to vector<64x1152xf32>
    %c0_7 = arith.constant 0 : index
    %c0_8 = arith.constant 0 : index
    %17 = vector.load %arg4[%c0_7, %c0_8] : memref<1152x128xf32, #tpu.memory_space<vmem>>, vector<1152x128xf32>
    %cst = arith.constant dense<0.000000e+00> : vector<64x128xf32>
    %18 = tpu.matmul %16, %17, %cst {dimension_numbers = #tpu.dot_dimension_numbers<[1], [0], [0], [1], [0, 0, 1, 1], [], []>} : vector<64x1152xf32>, vector<1152x128xf32>, vector<64x128xf32> -> vector<64x128xf32>
    %c0_9 = arith.constant 0 : index
    %c0_10 = arith.constant 0 : index
    %19 = vector.load %arg5[%c0_9, %c0_10] : memref<1x128xf32, #tpu.memory_space<vmem>>, vector<1x128xf32>
    %20 = vector.broadcast %19 : vector<1x128xf32> to vector<64x128xf32>
    %21 = arith.addf %18, %20 : vector<64x128xf32>
    %cst_11 = arith.constant 0.000000e+00 : f32
    %22 = vector.broadcast %cst_11 : f32 to vector<64x128xf32>
    %23 = arith.cmpf oge, %21, %22 : vector<64x128xf32>
    %cst_12 = arith.constant 0.00999999977 : f32
    %24 = vector.broadcast %cst_12 : f32 to vector<64x128xf32>
    %25 = arith.mulf %24, %21 : vector<64x128xf32>
    %26 = arith.select %23, %21, %25 : vector<64x128xi1>, vector<64x128xf32>
    %27 = vector.shape_cast %26 : vector<64x128xf32> to vector<8x8x128xf32>
    %c0_13 = arith.constant 0 : index
    %c0_14 = arith.constant 0 : index
    %c0_15 = arith.constant 0 : index
    %c0_16 = arith.constant 0 : index
    %28 = vector.load %arg6[%c0_13, %c0_14, %c0_15, %c0_16] : memref<1x8x8x128xf32, #tpu.memory_space<vmem>>, vector<1x8x8x128xf32>
    %29 = vector.shape_cast %28 : vector<1x8x8x128xf32> to vector<8x8x128xf32>
    %30 = vector.shape_cast %27 : vector<8x8x128xf32> to vector<1x8x8x128xf32>
    tpu.vector_store %arg6[%c0_13, %c0_14, %c0_15, %c0_16], %30 {strides = array<i32>} : memref<1x8x8x128xf32, #tpu.memory_space<vmem>>, vector<1x8x8x128xf32>,
    return
  }
  func.func @transform_0(%arg0: i32, %arg1: i32) -> (i32, i32, i32, i32) {
    %c0_i32 = arith.constant 0 : i32
    %c0_i32_0 = arith.constant 0 : i32
    %c0_i32_1 = arith.constant 0 : i32
    return %arg0, %arg1, %c0_i32, %c0_i32_0 : i32, i32, i32, i32
  }
  func.func @transform_1(%arg0: i32, %arg1: i32) -> (i32, i32, i32, i32) {
    %c1_i32 = arith.constant 1 : i32
    %0 = arith.addi %arg1, %c1_i32 : i32
    %c8_i32 = arith.constant 8 : i32
    %1 = arith.muli %0, %c8_i32 : i32
    %c0_i32 = arith.constant 0 : i32
    %c0_i32_0 = arith.constant 0 : i32
    %c0_i32_1 = arith.constant 0 : i32
    return %arg0, %1, %c0_i32, %c0_i32_0 : i32, i32, i32, i32
  }
  func.func @transform_2(%arg0: i32, %arg1: i32) -> (i32, i32) {
    %c0_i32 = arith.constant 0 : i32
    %c0_i32_0 = arith.constant 0 : i32
    %c0_i32_1 = arith.constant 0 : i32
    return %c0_i32, %c0_i32_0 : i32, i32
  }
  func.func @transform_3(%arg0: i32, %arg1: i32) -> (i32, i32) {
    %c0_i32 = arith.constant 0 : i32
    %c0_i32_0 = arith.constant 0 : i32
    %c0_i32_1 = arith.constant 0 : i32
    return %c0_i32, %c0_i32_0 : i32, i32
  }
  func.func @transform_4(%arg0: i32, %arg1: i32) -> (i32, i32, i32, i32) {
    %c0_i32 = arith.constant 0 : i32
    %c0_i32_0 = arith.constant 0 : i32
    %c0_i32_1 = arith.constant 0 : i32
    return %arg0, %arg1, %c0_i32, %c0_i32_0 : i32, i32, i32, i32
  }
}

</mosaic_0001>

<llo_original>
// kernel: downsampling_forward.1
$region0: #{downsampling_forward.1}
  #allocation0 [shape = 'u32[]', space=smem, size = 0x4, offset = 0x4, fixed_abs, tag = 'smem constant byte address 0x4 - core index']
  #allocation1 [shape = 'u32[144,128]{1,0:T(1,128)}', space=vmem, size = 0x12000, scoped, tag = 'internal scratch']
  %s0 = inlined_call_operand.vmem [shape: f32[2,9,9,512], index: 0, kind: input, shape index: {}, may-alias: {0,1}]
  %s1 = inlined_call_operand.vmem [shape: f32[2,9,9,512], index: 1, kind: input, shape index: {}, may-alias: {0,1}]
  %s2 = inlined_call_operand.vmem [shape: f32[1152,128], index: 2, kind: input, shape index: {}]
  %s3 = inlined_call_operand.vmem [shape: f32[1,128], index: 3, kind: input, shape index: {}]
  %s4 = inlined_call_operand.hbm [shape: f32[2,8,8,128], index: 4, kind: output, shape index: {}]
  %s5 = sld [smem:[#allocation0]]
  $region49: #{downsampling_forward.1} parent=0
    _
  %s7 = ssub.s32 1, %s5
  %s8 = scalar_select 0, %s7, %s5
  $region1: #{downsampling_forward.1} parent=0
    #allocation2 [shape = 'u8[65536]{0}', space=vmem, size = 0x10000, scoped, tag = 'output window, operand 0']
    #allocation3 [shape = 's32[2]{0}', space=sflag, size = 0x8, scoped, tag = 'scoped memory for downsampling_forward.1']
    %9 = vsyncpa [#allocation3], 0
    %s10 = scalar_lea.sflag [#allocation3], 1
    %11 = vsyncpa %s10, 0
    loop: start=0, step=1, limit=4
    $region2: #{downsampling_forward.1} parent=1 // loop_pre_header
      _
    $region3: #{downsampling_forward.1} parent=1 // loop_header
      %s13 = sphi 0, %s17
      %p14 = scmp.ge.s32.totalorder %s13, 4
      %s20 = sphi 0, %s32
      %s21 = sphi 0, %s28
      %s22 = sphi 0, %s20
      %s23 = sphi 0, %s21
      %s24 = sphi 0, %s22
      %s25 = sphi 0, %s23
      %s37 = sphi 0, %s39
      %s40 = sphi 0, %s37
      %s41 = sphi 0, %s40
      %s57 = sphi 0, %s41
      %s69 = sphi 0, %s71
      %s72 = sphi 0, %s69
      %s73 = sphi 0, %s72
      %s89 = sphi 0, %s73
      %s93 = sphi 0, %s93
      %s95 = sphi 0, %s93
      %s96 = sphi 0, %s95
      %s110 = sphi 0, %s96
      %s114 = sphi 0, %s114
      %s116 = sphi 0, %s114
      %s117 = sphi 0, %s116
      %s131 = sphi 0, %s117
      %s139 = sphi 0, %s141
      %s142 = sphi 0, %s139
      %s143 = sphi 0, %s142
      %s159 = sphi 0, %s143
    $region4: #{downsampling_forward.1} parent=1 // loop_header_branch
      %16 = sbr.rel (%p14) target = $region8
    $region5: #{downsampling_forward.1} parent=1 // loop_body
      %s18 = ssub.s32 %s13, 1
      %s19 = ssub.s32 %s13, 2
      %s26 = sadd.s32 1, %s21
      %p27 = scmp.ge.s32.totalorder %s26, 1
      %s28 = scalar_select %p27, 0, %s26
      %s29 = sadd.s32 1, %s20
      %s30 = scalar_select %p27, %s29, %s20
      %p31 = scmp.ge.s32.totalorder %s30, 2
      %s32 = scalar_select %p31, 0, %s30
      %s33 = ssub.s32 %s20, %s32
      %s34 = ssub.s32 %s21, %s28
      %s35 = sor.u32 %s33, %s34
      %p36 = scmp.eq.s32.totalorder %s35, 0
      %s38 = sadd.s32 %s37, 1
      %s39 = scalar_select %p36, %s37, %s38
      %p42 = pneg %p36
      %p43 = scmp.eq.s32.totalorder %s13, 1
      %p44 = por %p42, %p43
      %p45 = scmp.ne.s32.totalorder %s37, %s40
      %p46 = scmp.eq.s32.totalorder %s13, 0
      %p47 = por %p45, %p46
      %p48 = scmp.ne.s32.totalorder %s37, %s40
      %p49 = scmp.eq.s32.totalorder %s18, 1
      %p50 = por %p48, %p49
      %p51 = scmp.ne.s32.totalorder %s40, %s41
      %p52 = scmp.eq.s32.totalorder %s18, 0
      %p53 = por %p51, %p52
      %p54 = scmp.ne.s32.totalorder %s40, %s41
      %p55 = scmp.eq.s32.totalorder %s19, 1
      %p56 = por %p54, %p55
      %p58 = scmp.ne.s32.totalorder %s41, %s57
      %p59 = scmp.eq.s32.totalorder %s19, 0
      %p60 = por %p58, %p59
      %s61 = sadd.s32 %s21, 1
      %s62 = smul.u32 %s61, 8
      %s63 = sadd.s32 %s28, 1
      %s64 = smul.u32 %s63, 8
      %s65 = ssub.s32 %s20, %s32
      %s66 = ssub.s32 %s62, %s64
      %s67 = sor.u32 %s65, %s66
      %p68 = scmp.eq.s32.totalorder %s67, 0
      %s70 = sadd.s32 %s69, 1
      %s71 = scalar_select %p68, %s69, %s70
      %p74 = pneg %p68
      %p75 = scmp.eq.s32.totalorder %s13, 1
      %p76 = por %p74, %p75
      %p77 = scmp.ne.s32.totalorder %s69, %s72
      %p78 = scmp.eq.s32.totalorder %s13, 0
      %p79 = por %p77, %p78
      %p80 = scmp.ne.s32.totalorder %s69, %s72
      %p81 = scmp.eq.s32.totalorder %s18, 1
      %p82 = por %p80, %p81
      %p83 = scmp.ne.s32.totalorder %s72, %s73
      %p84 = scmp.eq.s32.totalorder %s18, 0
      %p85 = por %p83, %p84
      %p86 = scmp.ne.s32.totalorder %s72, %s73
      %p87 = scmp.eq.s32.totalorder %s19, 1
      %p88 = por %p86, %p87
      %p90 = scmp.ne.s32.totalorder %s73, %s89
      %p91 = scmp.eq.s32.totalorder %s19, 0
      %p92 = por %p90, %p91
      %s94 = sadd.s32 %s93, 1
      %p97 = scmp.eq.s32.totalorder %s13, 1
      %p98 = scmp.ne.s32.totalorder %s93, %s95
      %p99 = scmp.eq.s32.totalorder %s13, 0
      %p100 = por %p98, %p99
      %p101 = scmp.ne.s32.totalorder %s93, %s95
      %p102 = scmp.eq.s32.totalorder %s18, 1
      %p103 = por %p101, %p102
      %p104 = scmp.ne.s32.totalorder %s95, %s96
      %p105 = scmp.eq.s32.totalorder %s18, 0
      %p106 = por %p104, %p105
      %p107 = scmp.ne.s32.totalorder %s95, %s96
      %p108 = scmp.eq.s32.totalorder %s19, 1
      %p109 = por %p107, %p108
      %p111 = scmp.ne.s32.totalorder %s96, %s110
      %p112 = scmp.eq.s32.totalorder %s19, 0
      %p113 = por %p111, %p112
      %s115 = sadd.s32 %s114, 1
      %p118 = scmp.eq.s32.totalorder %s13, 1
      %p119 = scmp.ne.s32.totalorder %s114, %s116
      %p120 = scmp.eq.s32.totalorder %s13, 0
      %p121 = por %p119, %p120
      %p122 = scmp.ne.s32.totalorder %s114, %s116
      %p123 = scmp.eq.s32.totalorder %s18, 1
      %p124 = por %p122, %p123
      %p125 = scmp.ne.s32.totalorder %s116, %s117
      %p126 = scmp.eq.s32.totalorder %s18, 0
      %p127 = por %p125, %p126
      %p128 = scmp.ne.s32.totalorder %s116, %s117
      %p129 = scmp.eq.s32.totalorder %s19, 1
      %p130 = por %p128, %p129
      %p132 = scmp.ne.s32.totalorder %s117, %s131
      %p133 = scmp.eq.s32.totalorder %s19, 0
      %p134 = por %p132, %p133
      %s135 = ssub.s32 %s20, %s32
      %s136 = ssub.s32 %s21, %s28
      %s137 = sor.u32 %s135, %s136
      %p138 = scmp.eq.s32.totalorder %s137, 0
      %s140 = sadd.s32 %s139, 1
      %s141 = scalar_select %p138, %s139, %s140
      %p144 = pneg %p138
      %p145 = scmp.eq.s32.totalorder %s13, 1
      %p146 = por %p144, %p145
      %p147 = scmp.ne.s32.totalorder %s139, %s142
      %p148 = scmp.eq.s32.totalorder %s13, 0
      %p149 = por %p147, %p148
      %p150 = scmp.ne.s32.totalorder %s139, %s142
      %p151 = scmp.eq.s32.totalorder %s18, 1
      %p152 = por %p150, %p151
      %p153 = scmp.ne.s32.totalorder %s142, %s143
      %p154 = scmp.eq.s32.totalorder %s18, 0
      %p155 = por %p153, %p154
      %p156 = scmp.ne.s32.totalorder %s142, %s143
      %p157 = scmp.eq.s32.totalorder %s19, 1
      %p158 = por %p156, %p157
      %p160 = scmp.ne.s32.totalorder %s143, %s159
      %p161 = scmp.eq.s32.totalorder %s19, 0
      %p162 = por %p160, %p161
      %p163 = scmp.le.s32.totalorder 1, %s13
      %p164 = scmp.lt.s32.totalorder %s13, 3
      %p165 = pnand %p163, %p164
      %p166 = pneg %p165
      // Predicated region
      $region9: #{downsampling_forward.1} parent=5 // pred_check
        _
      $region10: #{downsampling_forward.1} parent=5 // pred_check_branch
        %168 = sbr.rel (%p165) target = $region12
      $region11: #{downsampling_forward.1} parent=5 // pred_region
        %s169 = ssub.s32 %s13, 1
        // Predicated region
        $region13: #{downsampling_forward.1} parent=11 // pred_check
          %p170 = pneg %p106
        $region14: #{downsampling_forward.1} parent=11 // pred_check_branch
          %172 = sbr.rel (%p170) target = $region16
        $region15: #{downsampling_forward.1} parent=11 // pred_region
          _
        $region16: #{downsampling_forward.1} parent=11 // pred_fallthru
          _
        // Predicated region
        $region17: #{downsampling_forward.1} parent=11 // pred_check
          %p173 = pneg %p127
        $region18: #{downsampling_forward.1} parent=11 // pred_check_branch
          %175 = sbr.rel (%p173) target = $region20
        $region19: #{downsampling_forward.1} parent=11 // pred_region
          _
        $region20: #{downsampling_forward.1} parent=11 // pred_fallthru
          _
      $region12: #{downsampling_forward.1} parent=5 // pred_fallthru
        _
      %p176 = scmp.lt.s32.totalorder %s13, 2
      // Predicated region
      $region21: #{downsampling_forward.1} parent=5 // pred_check
        %p177 = pneg %p176
      $region22: #{downsampling_forward.1} parent=5 // pred_check_branch
        %179 = sbr.rel (%p177) target = $region24
      $region23: #{downsampling_forward.1} parent=5 // pred_region
        // Predicated region
        $region25: #{downsampling_forward.1} parent=23 // pred_check
          %p180 = pneg %p47
        $region26: #{downsampling_forward.1} parent=23 // pred_check_branch
          %182 = sbr.rel (%p180) target = $region28
        $region27: #{downsampling_forward.1} parent=23 // pred_region
          %s183 = smul.u32 8, %s21
          %s184 = ssub.s32 9, %s183
          %p185 = scmp.lt.s32.totalorder %s184, 8
          %s186 = scalar_select %p185, %s184, 8
          %s187 = smul.u32 128, %s186
          %s188 = smul.u32 %s187, 2
          %s189 = smul.u32 %s188, 4
          %p190 = scmp.lt.s32.totalorder %s20, 1
          %s191 = scalar_select %p190, %s20, 1
          %p192 = scmp.lt.s32.totalorder %s183, 8
          %s193 = scalar_select %p192, %s183, 8
          %s194 = smul.addr %s193, 8
          %s195 = smul.addr %s191, 72
          %s196 = sadd.s32 %s194, %s195
          %s197 = smul.addr %s196, 8
          %s198 = scalar_lea.vmem %s0, %s197
          %s199 = smul.u32 8, %s21
          %s200 = ssub.s32 9, %s199
          %p201 = scmp.lt.s32.totalorder %s200, 8
          %s202 = scalar_select %p201, %s200, 8
          %s203 = smul.u32 128, %s202
          %s204 = smul.u32 %s203, 2
          %s205 = smul.u32 %s204, 4
        $region28: #{downsampling_forward.1} parent=23 // pred_fallthru
          _
        // Predicated region
        $region29: #{downsampling_forward.1} parent=23 // pred_check
          %p206 = pneg %p79
        $region30: #{downsampling_forward.1} parent=23 // pred_check_branch
          %208 = sbr.rel (%p206) target = $region32
        $region31: #{downsampling_forward.1} parent=23 // pred_region
          %s209 = sadd.s32 %s21, 1
          %s210 = smul.u32 %s209, 8
          %p211 = scmp.lt.s32.totalorder %s20, 1
          %s212 = scalar_select %p211, %s20, 1
          %p213 = scmp.lt.s32.totalorder %s210, 8
          %s214 = scalar_select %p213, %s210, 8
          %s215 = smul.addr %s214, 8
          %s216 = smul.addr %s212, 72
          %s217 = sadd.s32 %s215, %s216
          %s218 = smul.addr %s217, 8
          %s219 = scalar_lea.vmem %s1, %s218
          %s220 = sadd.s32 %s21, 1
          %s221 = smul.u32 %s220, 8
        $region32: #{downsampling_forward.1} parent=23 // pred_fallthru
          _
      $region24: #{downsampling_forward.1} parent=5 // pred_fallthru
        _
      %p222 = scmp.le.s32.totalorder 1, %s13
      %p223 = scmp.lt.s32.totalorder %s13, 3
      %p224 = pnand %p222, %p223
      %p225 = pneg %p224
      // Predicated region
      $region33: #{downsampling_forward.1} parent=5 // pred_check
        _
      $region34: #{downsampling_forward.1} parent=5 // pred_check_branch
        %227 = sbr.rel (%p224) target = $region36
      $region35: #{downsampling_forward.1} parent=5 // pred_region
        %s228 = ssub.s32 %s13, 1
        %s229 = smul.u32 8, %s23
        %s230 = ssub.s32 9, %s229
        %p231 = scmp.lt.s32.totalorder %s230, 8
        %s232 = scalar_select %p231, %s230, 8
        %s233 = smul.u32 128, %s232
        %s234 = smul.u32 %s233, 2
        %s235 = smul.u32 %s234, 4
        %p236 = scmp.lt.s32.totalorder %s22, 1
        %s237 = scalar_select %p236, %s22, 1
        %p238 = scmp.lt.s32.totalorder %s229, 8
        %s239 = scalar_select %p238, %s229, 8
        %s240 = smul.addr %s239, 8
        %s241 = smul.addr %s237, 72
        %s242 = sadd.s32 %s240, %s241
        %s243 = smul.addr %s242, 8
        %s244 = scalar_lea.vmem %s0, %s243
        %p245 = pneg %p53
        %p246 = pneg %p50
        %s247 = sadd.s32 %s23, 1
        %s248 = smul.u32 %s247, 8
        %p249 = scmp.lt.s32.totalorder %s22, 1
        %s250 = scalar_select %p249, %s22, 1
        %p251 = scmp.lt.s32.totalorder %s248, 8
        %s252 = scalar_select %p251, %s248, 8
        %s253 = smul.addr %s252, 8
        %s254 = smul.addr %s250, 72
        %s255 = sadd.s32 %s253, %s254
        %s256 = smul.addr %s255, 8
        %s257 = scalar_lea.vmem %s1, %s256
        %p258 = pneg %p85
        %p259 = pneg %p82
        %p260 = pneg %p106
        %p261 = pneg %p103
        %p262 = pneg %p127
        %p263 = pneg %p124
        %p264 = pneg %p155
        %p265 = pneg %p152
        %s266 = sand.u32 %s142, 1
        %s267 = scalar_lea.sflag [#allocation3], %s266
        %s268 = sand.u32 %s142, 1
        %s269 = smul.addr %s268, 64
        %s270 = scalar_lea.vmem [#allocation2], %s269
        %s271 = smul.u32 8, %s23
        %s272 = ssub.s32 9, %s271
        %p273 = scmp.lt.s32.totalorder %s272, 8
        %s274 = scalar_select %p273, %s272, 8
        %s275 = smul.u32 128, %s274
        %s276 = smul.u32 %s275, 2
        %s277 = smul.u32 %s276, 4
        %p278 = scmp.lt.s32.totalorder %s22, 1
        %s279 = scalar_select %p278, %s22, 1
        %p280 = scmp.lt.s32.totalorder %s271, 8
        %s281 = scalar_select %p280, %s271, 8
        %s282 = smul.addr %s281, 8
        %s283 = smul.addr %s279, 72
        %s284 = sadd.s32 %s282, %s283
        %s285 = smul.addr %s284, 8
        %s286 = scalar_lea.vmem %s0, %s285
        %s287 = smul.u32 8, %s23
        %s288 = ssub.s32 9, %s287
        %p289 = scmp.lt.s32.totalorder %s288, 8
        %s290 = scalar_select %p289, %s288, 8
        %s291 = smul.u32 128, %s290
        %s292 = smul.u32 %s291, 2
        %s293 = smul.u32 %s292, 4
        %s294 = sadd.s32 %s23, 1
        %s295 = smul.u32 %s294, 8
        %p296 = scmp.lt.s32.totalorder %s22, 1
        %s297 = scalar_select %p296, %s22, 1
        %p298 = scmp.lt.s32.totalorder %s295, 8
        %s299 = scalar_select %p298, %s295, 8
        %s300 = smul.addr %s299, 8
        %s301 = smul.addr %s297, 72
        %s302 = sadd.s32 %s300, %s301
        %s303 = smul.addr %s302, 8
        %s304 = scalar_lea.vmem %s1, %s303
        %s305 = sadd.s32 %s23, 1
        %s306 = smul.u32 %s305, 8
        %s307 = smul.u32 8, %s23
        %v308 = vld [vmem:[%s286] sm:$0xff]
        %v309 = vld [vmem:[%s286 + $0x8] sm:$0xff]
        %v310 = vld [vmem:[%s286 + $0x10] sm:$0xff]
        %v311 = vld [vmem:[%s286 + $0x18] sm:$0xff]
        %v312 = vld [vmem:[%s286 + $0x20] sm:$0x1]
        %v313 = vld [vmem:[%s286 + $0x30] sm:$0x1]
        %v314 = vld [vmem:[%s286 + $0x40] sm:$0xff]
        %v315 = vld [vmem:[%s286 + $0x48] sm:$0xff]
        %v316 = vld [vmem:[%s286 + $0x50] sm:$0xff]
        %v317 = vld [vmem:[%s286 + $0x58] sm:$0xff]
        %v318 = vld [vmem:[%s286 + $0x60] sm:$0x1]
        %v319 = vld [vmem:[%s286 + $0x70] sm:$0x1]
        %v320 = vld [vmem:[%s286 + $0x80] sm:$0xff]
        %v321 = vld [vmem:[%s286 + $0x88] sm:$0xff]
        %v322 = vld [vmem:[%s286 + $0x90] sm:$0xff]
        %v323 = vld [vmem:[%s286 + $0x98] sm:$0xff]
        %v324 = vld [vmem:[%s286 + $0xa0] sm:$0x1]
        %v325 = vld [vmem:[%s286 + $0xb0] sm:$0x1]
        %v326 = vld [vmem:[%s286 + $0xc0] sm:$0xff]
        %v327 = vld [vmem:[%s286 + $0xc8] sm:$0xff]
        %v328 = vld [vmem:[%s286 + $0xd0] sm:$0xff]
        %v329 = vld [vmem:[%s286 + $0xd8] sm:$0xff]
        %v330 = vld [vmem:[%s286 + $0xe0] sm:$0x1]
        %v331 = vld [vmem:[%s286 + $0xf0] sm:$0x1]
        %v332 = vld [vmem:[%s286 + $0x100] sm:$0xff]
        %v333 = vld [vmem:[%s286 + $0x108] sm:$0xff]
        %v334 = vld [vmem:[%s286 + $0x110] sm:$0xff]
        %v335 = vld [vmem:[%s286 + $0x118] sm:$0xff]
        %v336 = vld [vmem:[%s286 + $0x120] sm:$0x1]
        %v337 = vld [vmem:[%s286 + $0x130] sm:$0x1]
        %v338 = vld [vmem:[%s286 + $0x140] sm:$0xff]
        %v339 = vld [vmem:[%s286 + $0x148] sm:$0xff]
        %v340 = vld [vmem:[%s286 + $0x150] sm:$0xff]
        %v341 = vld [vmem:[%s286 + $0x158] sm:$0xff]
        %v342 = vld [vmem:[%s286 + $0x160] sm:$0x1]
        %v343 = vld [vmem:[%s286 + $0x170] sm:$0x1]
        %v344 = vld [vmem:[%s286 + $0x180] sm:$0xff]
        %v345 = vld [vmem:[%s286 + $0x188] sm:$0xff]
        %v346 = vld [vmem:[%s286 + $0x190] sm:$0xff]
        %v347 = vld [vmem:[%s286 + $0x198] sm:$0xff]
        %v348 = vld [vmem:[%s286 + $0x1a0] sm:$0x1]
        %v349 = vld [vmem:[%s286 + $0x1b0] sm:$0x1]
        %v350 = vld [vmem:[%s286 + $0x1c0] sm:$0xff]
        %v351 = vld [vmem:[%s286 + $0x1c8] sm:$0xff]
        %v352 = vld [vmem:[%s286 + $0x1d0] sm:$0xff]
        %v353 = vld [vmem:[%s286 + $0x1d8] sm:$0xff]
        %v354 = vld [vmem:[%s286 + $0x1e0] sm:$0x1]
        %v355 = vld [vmem:[%s286 + $0x1f0] sm:$0x1]
        %v356 = vld [vmem:[%s304] sm:$0xff]
        %v357 = vld [vmem:[%s304 + $0x8] sm:$0xff]
        %v358 = vld [vmem:[%s304 + $0x20] sm:$0x1]
        %vm375 = vcmask 1046528
        %v376 = vrot.slane %v308, 1
        %v377 = vrot.slane %v312, 1
        %v378 = vsel %vm375, %v376, %v377
        %v379 = vrot.slane %v314, 1
        %v380 = vrot.slane %v318, 1
        %v381 = vsel %vm375, %v379, %v380
        %v382 = vrot.slane %v320, 1
        %v383 = vrot.slane %v324, 1
        %v384 = vsel %vm375, %v382, %v383
        %v385 = vrot.slane %v326, 1
        %v386 = vrot.slane %v330, 1
        %v387 = vsel %vm375, %v385, %v386
        %v388 = vrot.slane %v332, 1
        %v389 = vrot.slane %v336, 1
        %v390 = vsel %vm375, %v388, %v389
        %v391 = vrot.slane %v338, 1
        %v392 = vrot.slane %v342, 1
        %v393 = vsel %vm375, %v391, %v392
        %v394 = vrot.slane %v344, 1
        %v395 = vrot.slane %v348, 1
        %v396 = vsel %vm375, %v394, %v395
        %v397 = vrot.slane %v350, 1
        %v398 = vrot.slane %v354, 1
        %v399 = vsel %vm375, %v397, %v398
        %v424 = vrot.slane %v310, 1
        %v425 = vrot.slane %v313, 1
        %v426 = vsel %vm375, %v424, %v425
        %v427 = vrot.slane %v316, 1
        %v428 = vrot.slane %v319, 1
        %v429 = vsel %vm375, %v427, %v428
        %v430 = vrot.slane %v322, 1
        %v431 = vrot.slane %v325, 1
        %v432 = vsel %vm375, %v430, %v431
        %v433 = vrot.slane %v328, 1
        %v434 = vrot.slane %v331, 1
        %v435 = vsel %vm375, %v433, %v434
        %v436 = vrot.slane %v334, 1
        %v437 = vrot.slane %v337, 1
        %v438 = vsel %vm375, %v436, %v437
        %v439 = vrot.slane %v340, 1
        %v440 = vrot.slane %v343, 1
        %v441 = vsel %vm375, %v439, %v440
        %v442 = vrot.slane %v346, 1
        %v443 = vrot.slane %v349, 1
        %v444 = vsel %vm375, %v442, %v443
        %v445 = vrot.slane %v352, 1
        %v446 = vrot.slane %v355, 1
        %v447 = vsel %vm375, %v445, %v446
        %v458 = vrot.slane %v356, 1
        %v459 = vrot.slane %v358, 1
        %v460 = vsel %vm375, %v458, %v459
        %v462 = vld [vmem:[%s2] sm:$0xff]
        %v463 = vld [vmem:[%s2 + $0x8] sm:$0xff]
        %v464 = vld [vmem:[%s2 + $0x10] sm:$0xff]
        %v465 = vld [vmem:[%s2 + $0x18] sm:$0xff]
        %v466 = vld [vmem:[%s2 + $0x20] sm:$0xff]
        %v467 = vld [vmem:[%s2 + $0x28] sm:$0xff]
        %v468 = vld [vmem:[%s2 + $0x30] sm:$0xff]
        %v469 = vld [vmem:[%s2 + $0x38] sm:$0xff]
        %v470 = vld [vmem:[%s2 + $0x40] sm:$0xff]
        %v471 = vld [vmem:[%s2 + $0x48] sm:$0xff]
        %v472 = vld [vmem:[%s2 + $0x50] sm:$0xff]
        %v473 = vld [vmem:[%s2 + $0x58] sm:$0xff]
        %v474 = vld [vmem:[%s2 + $0x60] sm:$0xff]
        %v475 = vld [vmem:[%s2 + $0x68] sm:$0xff]
        %v476 = vld [vmem:[%s2 + $0x70] sm:$0xff]
        %v477 = vld [vmem:[%s2 + $0x78] sm:$0xff]
        %v478 = vld [vmem:[%s2 + $0x80] sm:$0xff]
        %v479 = vld [vmem:[%s2 + $0x88] sm:$0xff]
        %v480 = vld [vmem:[%s2 + $0x90] sm:$0xff]
        %v481 = vld [vmem:[%s2 + $0x98] sm:$0xff]
        %v482 = vld [vmem:[%s2 + $0xa0] sm:$0xff]
        %v483 = vld [vmem:[%s2 + $0xa8] sm:$0xff]
        %v484 = vld [vmem:[%s2 + $0xb0] sm:$0xff]
        %v485 = vld [vmem:[%s2 + $0xb8] sm:$0xff]
        %v486 = vld [vmem:[%s2 + $0xc0] sm:$0xff]
        %v487 = vld [vmem:[%s2 + $0xc8] sm:$0xff]
        %v488 = vld [vmem:[%s2 + $0xd0] sm:$0xff]
        %v489 = vld [vmem:[%s2 + $0xd8] sm:$0xff]
        %v490 = vld [vmem:[%s2 + $0xe0] sm:$0xff]
        %v491 = vld [vmem:[%s2 + $0xe8] sm:$0xff]
        %v492 = vld [vmem:[%s2 + $0xf0] sm:$0xff]
        %v493 = vld [vmem:[%s2 + $0xf8] sm:$0xff]
        %v494 = vld [vmem:[%s2 + $0x100] sm:$0xff]
        %v495 = vld [vmem:[%s2 + $0x108] sm:$0xff]
        %v496 = vld [vmem:[%s2 + $0x110] sm:$0xff]
        %v497 = vld [vmem:[%s2 + $0x118] sm:$0xff]
        %v498 = vld [vmem:[%s2 + $0x120] sm:$0xff]
        %v499 = vld [vmem:[%s2 + $0x128] sm:$0xff]
        %v500 = vld [vmem:[%s2 + $0x130] sm:$0xff]
        %v501 = vld [vmem:[%s2 + $0x138] sm:$0xff]
        %v502 = vld [vmem:[%s2 + $0x140] sm:$0xff]
        %v503 = vld [vmem:[%s2 + $0x148] sm:$0xff]
        %v504 = vld [vmem:[%s2 + $0x150] sm:$0xff]
        %v505 = vld [vmem:[%s2 + $0x158] sm:$0xff]
        %v506 = vld [vmem:[%s2 + $0x160] sm:$0xff]
        %v507 = vld [vmem:[%s2 + $0x168] sm:$0xff]
        %v508 = vld [vmem:[%s2 + $0x170] sm:$0xff]
        %v509 = vld [vmem:[%s2 + $0x178] sm:$0xff]
        %v510 = vld [vmem:[%s2 + $0x180] sm:$0xff]
        %v511 = vld [vmem:[%s2 + $0x188] sm:$0xff]
        %v512 = vld [vmem:[%s2 + $0x190] sm:$0xff]
        %v513 = vld [vmem:[%s2 + $0x198] sm:$0xff]
        %v514 = vld [vmem:[%s2 + $0x1a0] sm:$0xff]
        %v515 = vld [vmem:[%s2 + $0x1a8] sm:$0xff]
        %v516 = vld [vmem:[%s2 + $0x1b0] sm:$0xff]
        %v517 = vld [vmem:[%s2 + $0x1b8] sm:$0xff]
        %v518 = vld [vmem:[%s2 + $0x1c0] sm:$0xff]
        %v519 = vld [vmem:[%s2 + $0x1c8] sm:$0xff]
        %v520 = vld [vmem:[%s2 + $0x1d0] sm:$0xff]
        %v521 = vld [vmem:[%s2 + $0x1d8] sm:$0xff]
        %v522 = vld [vmem:[%s2 + $0x1e0] sm:$0xff]
        %v523 = vld [vmem:[%s2 + $0x1e8] sm:$0xff]
        %v524 = vld [vmem:[%s2 + $0x1f0] sm:$0xff]
        %v525 = vld [vmem:[%s2 + $0x1f8] sm:$0xff]
        %v526 = vld [vmem:[%s2 + $0x200] sm:$0xff]
        %v527 = vld [vmem:[%s2 + $0x208] sm:$0xff]
        %v528 = vld [vmem:[%s2 + $0x210] sm:$0xff]
        %v529 = vld [vmem:[%s2 + $0x218] sm:$0xff]
        %v530 = vld [vmem:[%s2 + $0x220] sm:$0xff]
        %v531 = vld [vmem:[%s2 + $0x228] sm:$0xff]
        %v532 = vld [vmem:[%s2 + $0x230] sm:$0xff]
        %v533 = vld [vmem:[%s2 + $0x238] sm:$0xff]
        %v534 = vld [vmem:[%s2 + $0x240] sm:$0xff]
        %v535 = vld [vmem:[%s2 + $0x248] sm:$0xff]
        %v536 = vld [vmem:[%s2 + $0x250] sm:$0xff]
        %v537 = vld [vmem:[%s2 + $0x258] sm:$0xff]
        %v538 = vld [vmem:[%s2 + $0x260] sm:$0xff]
        %v539 = vld [vmem:[%s2 + $0x268] sm:$0xff]
        %v540 = vld [vmem:[%s2 + $0x270] sm:$0xff]
        %v541 = vld [vmem:[%s2 + $0x278] sm:$0xff]
        %v542 = vld [vmem:[%s2 + $0x280] sm:$0xff]
        %v543 = vld [vmem:[%s2 + $0x288] sm:$0xff]
        %v544 = vld [vmem:[%s2 + $0x290] sm:$0xff]
        %v545 = vld [vmem:[%s2 + $0x298] sm:$0xff]
        %v546 = vld [vmem:[%s2 + $0x2a0] sm:$0xff]
        %v547 = vld [vmem:[%s2 + $0x2a8] sm:$0xff]
        %v548 = vld [vmem:[%s2 + $0x2b0] sm:$0xff]
        %v549 = vld [vmem:[%s2 + $0x2b8] sm:$0xff]
        %v550 = vld [vmem:[%s2 + $0x2c0] sm:$0xff]
        %v551 = vld [vmem:[%s2 + $0x2c8] sm:$0xff]
        %v552 = vld [vmem:[%s2 + $0x2d0] sm:$0xff]
        %v553 = vld [vmem:[%s2 + $0x2d8] sm:$0xff]
        %v554 = vld [vmem:[%s2 + $0x2e0] sm:$0xff]
        %v555 = vld [vmem:[%s2 + $0x2e8] sm:$0xff]
        %v556 = vld [vmem:[%s2 + $0x2f0] sm:$0xff]
        %v557 = vld [vmem:[%s2 + $0x2f8] sm:$0xff]
        %v558 = vld [vmem:[%s2 + $0x300] sm:$0xff]
        %v559 = vld [vmem:[%s2 + $0x308] sm:$0xff]
        %v560 = vld [vmem:[%s2 + $0x310] sm:$0xff]
        %v561 = vld [vmem:[%s2 + $0x318] sm:$0xff]
        %v562 = vld [vmem:[%s2 + $0x320] sm:$0xff]
        %v563 = vld [vmem:[%s2 + $0x328] sm:$0xff]
        %v564 = vld [vmem:[%s2 + $0x330] sm:$0xff]
        %v565 = vld [vmem:[%s2 + $0x338] sm:$0xff]
        %v566 = vld [vmem:[%s2 + $0x340] sm:$0xff]
        %v567 = vld [vmem:[%s2 + $0x348] sm:$0xff]
        %v568 = vld [vmem:[%s2 + $0x350] sm:$0xff]
        %v569 = vld [vmem:[%s2 + $0x358] sm:$0xff]
        %v570 = vld [vmem:[%s2 + $0x360] sm:$0xff]
        %v571 = vld [vmem:[%s2 + $0x368] sm:$0xff]
        %v572 = vld [vmem:[%s2 + $0x370] sm:$0xff]
        %v573 = vld [vmem:[%s2 + $0x378] sm:$0xff]
        %v574 = vld [vmem:[%s2 + $0x380] sm:$0xff]
        %v575 = vld [vmem:[%s2 + $0x388] sm:$0xff]
        %v576 = vld [vmem:[%s2 + $0x390] sm:$0xff]
        %v577 = vld [vmem:[%s2 + $0x398] sm:$0xff]
        %v578 = vld [vmem:[%s2 + $0x3a0] sm:$0xff]
        %v579 = vld [vmem:[%s2 + $0x3a8] sm:$0xff]
        %v580 = vld [vmem:[%s2 + $0x3b0] sm:$0xff]
        %v581 = vld [vmem:[%s2 + $0x3b8] sm:$0xff]
        %v582 = vld [vmem:[%s2 + $0x3c0] sm:$0xff]
        %v583 = vld [vmem:[%s2 + $0x3c8] sm:$0xff]
        %v584 = vld [vmem:[%s2 + $0x3d0] sm:$0xff]
        %v585 = vld [vmem:[%s2 + $0x3d8] sm:$0xff]
        %v586 = vld [vmem:[%s2 + $0x3e0] sm:$0xff]
        %v587 = vld [vmem:[%s2 + $0x3e8] sm:$0xff]
        %v588 = vld [vmem:[%s2 + $0x3f0] sm:$0xff]
        %v589 = vld [vmem:[%s2 + $0x3f8] sm:$0xff]
        %v590 = vld [vmem:[%s2 + $0x400] sm:$0xff]
        %v591 = vld [vmem:[%s2 + $0x408] sm:$0xff]
        %v592 = vld [vmem:[%s2 + $0x410] sm:$0xff]
        %v593 = vld [vmem:[%s2 + $0x418] sm:$0xff]
        %v594 = vld [vmem:[%s2 + $0x420] sm:$0xff]
        %v595 = vld [vmem:[%s2 + $0x428] sm:$0xff]
        %v596 = vld [vmem:[%s2 + $0x430] sm:$0xff]
        %v597 = vld [vmem:[%s2 + $0x438] sm:$0xff]
        %v598 = vld [vmem:[%s2 + $0x440] sm:$0xff]
        %v599 = vld [vmem:[%s2 + $0x448] sm:$0xff]
        %v600 = vld [vmem:[%s2 + $0x450] sm:$0xff]
        %v601 = vld [vmem:[%s2 + $0x458] sm:$0xff]
        %v602 = vld [vmem:[%s2 + $0x460] sm:$0xff]
        %v603 = vld [vmem:[%s2 + $0x468] sm:$0xff]
        %v604 = vld [vmem:[%s2 + $0x470] sm:$0xff]
        %v605 = vld [vmem:[%s2 + $0x478] sm:$0xff]
        %v606 = vld [vmem:[%s3] sm:$0x1]
        %v608 = vlaneseq
        %v609 = vshrl.u32 %v608, 7
        %v610 = vsub.s32 0, %v609
        %v611 = vrot.slane %v606, %v610
        %613 = vmatprep.subr.mxu0 0.0
        %614 = vmatpush1.msra.mxu0 %v477
        %615 = vmatprep.subr.mxu0 0.0
        %616 = vmatpush1.msra.mxu0 %v476
        %617 = vmatprep.subr.mxu0 0.0
        %618 = vmatpush1.msra.mxu0 %v475
        %619 = vmatprep.subr.mxu0 0.0
        %620 = vmatpush1.msra.mxu0 %v474
        %621 = vmatprep.subr.mxu0 0.0
        %622 = vmatpush1.msra.mxu0 %v473
        %623 = vmatprep.subr.mxu0 0.0
        %624 = vmatpush1.msra.mxu0 %v472
        %625 = vmatprep.subr.mxu0 0.0
        %626 = vmatpush1.msra.mxu0 %v471
        %627 = vmatprep.subr.mxu0 0.0
        %628 = vmatpush1.msra.mxu0 %v470
        %629 = vmatprep.subr.mxu0 0.0
        %630 = vmatpush1.msra.mxu0 %v469
        %631 = vmatprep.subr.mxu0 0.0
        %632 = vmatpush1.msra.mxu0 %v468
        %633 = vmatprep.subr.mxu0 0.0
        %634 = vmatpush1.msra.mxu0 %v467
        %635 = vmatprep.subr.mxu0 0.0
        %636 = vmatpush1.msra.mxu0 %v466
        %637 = vmatprep.subr.mxu0 0.0
        %638 = vmatpush1.msra.mxu0 %v465
        %639 = vmatprep.subr.mxu0 0.0
        %640 = vmatpush1.msra.mxu0 %v464
        %641 = vmatprep.subr.mxu0 0.0
        %642 = vmatpush1.msra.mxu0 %v463
        %643 = vmatprep.subr.mxu0 0.0
        %644 = vmatpush1.msra.mxu0 %v462
        %645 = vmatprep.subr.mxu0 0.0
        %646 = vmatpush2.msra.mxu0 %v493
        %647 = vmatprep.subr.mxu0 0.0
        %648 = vmatpush2.msra.mxu0 %v492
        %649 = vmatprep.subr.mxu0 0.0
        %650 = vmatpush2.msra.mxu0 %v491
        %651 = vmatprep.subr.mxu0 0.0
        %652 = vmatpush2.msra.mxu0 %v490
        %653 = vmatprep.subr.mxu0 0.0
        %654 = vmatpush2.msra.mxu0 %v489
        %655 = vmatprep.subr.mxu0 0.0
        %656 = vmatpush2.msra.mxu0 %v488
        %657 = vmatprep.subr.mxu0 0.0
        %658 = vmatpush2.msra.mxu0 %v487
        %659 = vmatprep.subr.mxu0 0.0
        %660 = vmatpush2.msra.mxu0 %v486
        %661 = vmatprep.subr.mxu0 0.0
        %662 = vmatpush2.msra.mxu0 %v485
        %663 = vmatprep.subr.mxu0 0.0
        %664 = vmatpush2.msra.mxu0 %v484
        %665 = vmatprep.subr.mxu0 0.0
        %666 = vmatpush2.msra.mxu0 %v483
        %667 = vmatprep.subr.mxu0 0.0
        %668 = vmatpush2.msra.mxu0 %v482
        %669 = vmatprep.subr.mxu0 0.0
        %670 = vmatpush2.msra.mxu0 %v481
        %671 = vmatprep.subr.mxu0 0.0
        %672 = vmatpush2.msra.mxu0 %v480
        %673 = vmatprep.subr.mxu0 0.0
        %674 = vmatpush2.msra.mxu0 %v479
        %675 = vmatprep.subr.mxu0 0.0
        %676 = vmatpush2.msra.mxu0 %v478
        %677 = vmatprep.mubr.f32.mxu0 %v309
        %678 = vmatmul.mubr.f32.gmra.mxu0 %v308
        %v679 = vpop.f32.mrf.mxu0
        %v680 = vadd.f32 %v611, %v679
        %v681 = vpop.f32.mrf.mxu0
        %682 = vmatprep.mubr.f32.mxu0 %v315
        %683 = vmatmul.mubr.f32.gmra.mxu0 %v314
        %v684 = vpop.f32.mrf.mxu0
        %v685 = vadd.f32 %v611, %v684
        %v686 = vpop.f32.mrf.mxu0
        %687 = vmatprep.mubr.f32.mxu0 %v321
        %688 = vmatmul.mubr.f32.gmra.mxu0 %v320
        %v689 = vpop.f32.mrf.mxu0
        %v690 = vadd.f32 %v611, %v689
        %v691 = vpop.f32.mrf.mxu0
        %692 = vmatprep.mubr.f32.mxu0 %v327
        %693 = vmatmul.mubr.f32.gmra.mxu0 %v326
        %v694 = vpop.f32.mrf.mxu0
        %v695 = vadd.f32 %v611, %v694
        %v696 = vpop.f32.mrf.mxu0
        %697 = vmatprep.mubr.f32.mxu0 %v333
        %698 = vmatmul.mubr.f32.gmra.mxu0 %v332
        %v699 = vpop.f32.mrf.mxu0
        %v700 = vadd.f32 %v611, %v699
        %v701 = vpop.f32.mrf.mxu0
        %702 = vmatprep.mubr.f32.mxu0 %v339
        %703 = vmatmul.mubr.f32.gmra.mxu0 %v338
        %v704 = vpop.f32.mrf.mxu0
        %v705 = vadd.f32 %v611, %v704
        %v706 = vpop.f32.mrf.mxu0
        %707 = vmatprep.mubr.f32.mxu0 %v345
        %708 = vmatmul.mubr.f32.gmra.mxu0 %v344
        %v709 = vpop.f32.mrf.mxu0
        %v710 = vadd.f32 %v611, %v709
        %v711 = vpop.f32.mrf.mxu0
        %712 = vmatprep.mubr.f32.mxu0 %v351
        %713 = vmatmul.mubr.f32.gmra.mxu0 %v350
        %v714 = vpop.f32.mrf.mxu0
        %v715 = vadd.f32 %v611, %v714
        %v716 = vpop.f32.mrf.mxu0
        %717 = vdwg.mxu0
        %718 = vmatprep.subr.mxu0 0.0
        %719 = vmatpush1.msra.mxu0 %v509
        %720 = vmatprep.subr.mxu0 0.0
        %721 = vmatpush1.msra.mxu0 %v508
        %722 = vmatprep.subr.mxu0 0.0
        %723 = vmatpush1.msra.mxu0 %v507
        %724 = vmatprep.subr.mxu0 0.0
        %725 = vmatpush1.msra.mxu0 %v506
        %726 = vmatprep.subr.mxu0 0.0
        %727 = vmatpush1.msra.mxu0 %v505
        %728 = vmatprep.subr.mxu0 0.0
        %729 = vmatpush1.msra.mxu0 %v504
        %730 = vmatprep.subr.mxu0 0.0
        %731 = vmatpush1.msra.mxu0 %v503
        %732 = vmatprep.subr.mxu0 0.0
        %733 = vmatpush1.msra.mxu0 %v502
        %734 = vmatprep.subr.mxu0 0.0
        %735 = vmatpush1.msra.mxu0 %v501
        %736 = vmatprep.subr.mxu0 0.0
        %737 = vmatpush1.msra.mxu0 %v500
        %738 = vmatprep.subr.mxu0 0.0
        %739 = vmatpush1.msra.mxu0 %v499
        %740 = vmatprep.subr.mxu0 0.0
        %741 = vmatpush1.msra.mxu0 %v498
        %742 = vmatprep.subr.mxu0 0.0
        %743 = vmatpush1.msra.mxu0 %v497
        %744 = vmatprep.subr.mxu0 0.0
        %745 = vmatpush1.msra.mxu0 %v496
        %746 = vmatprep.subr.mxu0 0.0
        %747 = vmatpush1.msra.mxu0 %v495
        %748 = vmatprep.subr.mxu0 0.0
        %749 = vmatpush1.msra.mxu0 %v494
        %750 = vmatprep.subr.mxu0 0.0
        %751 = vmatpush2.msra.mxu0 %v525
        %752 = vmatprep.subr.mxu0 0.0
        %753 = vmatpush2.msra.mxu0 %v524
        %754 = vmatprep.subr.mxu0 0.0
        %755 = vmatpush2.msra.mxu0 %v523
        %756 = vmatprep.subr.mxu0 0.0
        %757 = vmatpush2.msra.mxu0 %v522
        %758 = vmatprep.subr.mxu0 0.0
        %759 = vmatpush2.msra.mxu0 %v521
        %760 = vmatprep.subr.mxu0 0.0
        %761 = vmatpush2.msra.mxu0 %v520
        %762 = vmatprep.subr.mxu0 0.0
        %763 = vmatpush2.msra.mxu0 %v519
        %764 = vmatprep.subr.mxu0 0.0
        %765 = vmatpush2.msra.mxu0 %v518
        %766 = vmatprep.subr.mxu0 0.0
        %767 = vmatpush2.msra.mxu0 %v517
        %768 = vmatprep.subr.mxu0 0.0
        %769 = vmatpush2.msra.mxu0 %v516
        %770 = vmatprep.subr.mxu0 0.0
        %771 = vmatpush2.msra.mxu0 %v515
        %772 = vmatprep.subr.mxu0 0.0
        %773 = vmatpush2.msra.mxu0 %v514
        %774 = vmatprep.subr.mxu0 0.0
        %775 = vmatpush2.msra.mxu0 %v513
        %776 = vmatprep.subr.mxu0 0.0
        %777 = vmatpush2.msra.mxu0 %v512
        %778 = vmatprep.subr.mxu0 0.0
        %779 = vmatpush2.msra.mxu0 %v511
        %780 = vmatprep.subr.mxu0 0.0
        %781 = vmatpush2.msra.mxu0 %v510
        %782 = vmatprep.mubr.f32.mxu0 %v310
        %783 = vmatmul.mubr.f32.gmra.mxu0 %v378
        %v784 = vpop.f32.mrf.mxu0
        %v785 = vadd.f32 %v680, %v784
        %v786 = vpop.f32.mrf.mxu0
        %787 = vmatprep.mubr.f32.mxu0 %v316
        %788 = vmatmul.mubr.f32.gmra.mxu0 %v381
        %v789 = vpop.f32.mrf.mxu0
        %v790 = vadd.f32 %v685, %v789
        %v791 = vpop.f32.mrf.mxu0
        %792 = vmatprep.mubr.f32.mxu0 %v322
        %793 = vmatmul.mubr.f32.gmra.mxu0 %v384
        %v794 = vpop.f32.mrf.mxu0
        %v795 = vadd.f32 %v690, %v794
        %v796 = vpop.f32.mrf.mxu0
        %797 = vmatprep.mubr.f32.mxu0 %v328
        %798 = vmatmul.mubr.f32.gmra.mxu0 %v387
        %v799 = vpop.f32.mrf.mxu0
        %v800 = vadd.f32 %v695, %v799
        %v801 = vpop.f32.mrf.mxu0
        %802 = vmatprep.mubr.f32.mxu0 %v334
        %803 = vmatmul.mubr.f32.gmra.mxu0 %v390
        %v804 = vpop.f32.mrf.mxu0
        %v805 = vadd.f32 %v700, %v804
        %v806 = vpop.f32.mrf.mxu0
        %807 = vmatprep.mubr.f32.mxu0 %v340
        %808 = vmatmul.mubr.f32.gmra.mxu0 %v393
        %v809 = vpop.f32.mrf.mxu0
        %v810 = vadd.f32 %v705, %v809
        %v811 = vpop.f32.mrf.mxu0
        %812 = vmatprep.mubr.f32.mxu0 %v346
        %813 = vmatmul.mubr.f32.gmra.mxu0 %v396
        %v814 = vpop.f32.mrf.mxu0
        %v815 = vadd.f32 %v710, %v814
        %v816 = vpop.f32.mrf.mxu0
        %817 = vmatprep.mubr.f32.mxu0 %v352
        %818 = vmatmul.mubr.f32.gmra.mxu0 %v399
        %v819 = vpop.f32.mrf.mxu0
        %v820 = vadd.f32 %v715, %v819
        %v821 = vpop.f32.mrf.mxu0
        %822 = vdwg.mxu0
        %823 = vmatprep.subr.mxu0 0.0
        %824 = vmatpush1.msra.mxu0 %v541
        %825 = vmatprep.subr.mxu0 0.0
        %826 = vmatpush1.msra.mxu0 %v540
        %827 = vmatprep.subr.mxu0 0.0
        %828 = vmatpush1.msra.mxu0 %v539
        %829 = vmatprep.subr.mxu0 0.0
        %830 = vmatpush1.msra.mxu0 %v538
        %831 = vmatprep.subr.mxu0 0.0
        %832 = vmatpush1.msra.mxu0 %v537
        %833 = vmatprep.subr.mxu0 0.0
        %834 = vmatpush1.msra.mxu0 %v536
        %835 = vmatprep.subr.mxu0 0.0
        %836 = vmatpush1.msra.mxu0 %v535
        %837 = vmatprep.subr.mxu0 0.0
        %838 = vmatpush1.msra.mxu0 %v534
        %839 = vmatprep.subr.mxu0 0.0
        %840 = vmatpush1.msra.mxu0 %v533
        %841 = vmatprep.subr.mxu0 0.0
        %842 = vmatpush1.msra.mxu0 %v532
        %843 = vmatprep.subr.mxu0 0.0
        %844 = vmatpush1.msra.mxu0 %v531
        %845 = vmatprep.subr.mxu0 0.0
        %846 = vmatpush1.msra.mxu0 %v530
        %847 = vmatprep.subr.mxu0 0.0
        %848 = vmatpush1.msra.mxu0 %v529
        %849 = vmatprep.subr.mxu0 0.0
        %850 = vmatpush1.msra.mxu0 %v528
        %851 = vmatprep.subr.mxu0 0.0
        %852 = vmatpush1.msra.mxu0 %v527
        %853 = vmatprep.subr.mxu0 0.0
        %854 = vmatpush1.msra.mxu0 %v526
        %855 = vmatprep.subr.mxu0 0.0
        %856 = vmatpush2.msra.mxu0 %v557
        %857 = vmatprep.subr.mxu0 0.0
        %858 = vmatpush2.msra.mxu0 %v556
        %859 = vmatprep.subr.mxu0 0.0
        %860 = vmatpush2.msra.mxu0 %v555
        %861 = vmatprep.subr.mxu0 0.0
        %862 = vmatpush2.msra.mxu0 %v554
        %863 = vmatprep.subr.mxu0 0.0
        %864 = vmatpush2.msra.mxu0 %v553
        %865 = vmatprep.subr.mxu0 0.0
        %866 = vmatpush2.msra.mxu0 %v552
        %867 = vmatprep.subr.mxu0 0.0
        %868 = vmatpush2.msra.mxu0 %v551
        %869 = vmatprep.subr.mxu0 0.0
        %870 = vmatpush2.msra.mxu0 %v550
        %871 = vmatprep.subr.mxu0 0.0
        %872 = vmatpush2.msra.mxu0 %v549
        %873 = vmatprep.subr.mxu0 0.0
        %874 = vmatpush2.msra.mxu0 %v548
        %875 = vmatprep.subr.mxu0 0.0
        %876 = vmatpush2.msra.mxu0 %v547
        %877 = vmatprep.subr.mxu0 0.0
        %878 = vmatpush2.msra.mxu0 %v546
        %879 = vmatprep.subr.mxu0 0.0
        %880 = vmatpush2.msra.mxu0 %v545
        %881 = vmatprep.subr.mxu0 0.0
        %882 = vmatpush2.msra.mxu0 %v544
        %883 = vmatprep.subr.mxu0 0.0
        %884 = vmatpush2.msra.mxu0 %v543
        %885 = vmatprep.subr.mxu0 0.0
        %886 = vmatpush2.msra.mxu0 %v542
        %887 = vmatprep.mubr.f32.mxu0 %v426
        %888 = vmatmul.mubr.f32.gmra.mxu0 %v311
        %v889 = vpop.f32.mrf.mxu0
        %v890 = vadd.f32 %v785, %v889
        %v891 = vpop.f32.mrf.mxu0
        %892 = vmatprep.mubr.f32.mxu0 %v429
        %893 = vmatmul.mubr.f32.gmra.mxu0 %v317
        %v894 = vpop.f32.mrf.mxu0
        %v895 = vadd.f32 %v790, %v894
        %v896 = vpop.f32.mrf.mxu0
        %897 = vmatprep.mubr.f32.mxu0 %v432
        %898 = vmatmul.mubr.f32.gmra.mxu0 %v323
        %v899 = vpop.f32.mrf.mxu0
        %v900 = vadd.f32 %v795, %v899
        %v901 = vpop.f32.mrf.mxu0
        %902 = vmatprep.mubr.f32.mxu0 %v435
        %903 = vmatmul.mubr.f32.gmra.mxu0 %v329
        %v904 = vpop.f32.mrf.mxu0
        %v905 = vadd.f32 %v800, %v904
        %v906 = vpop.f32.mrf.mxu0
        %907 = vmatprep.mubr.f32.mxu0 %v438
        %908 = vmatmul.mubr.f32.gmra.mxu0 %v335
        %v909 = vpop.f32.mrf.mxu0
        %v910 = vadd.f32 %v805, %v909
        %v911 = vpop.f32.mrf.mxu0
        %912 = vmatprep.mubr.f32.mxu0 %v441
        %913 = vmatmul.mubr.f32.gmra.mxu0 %v341
        %v914 = vpop.f32.mrf.mxu0
        %v915 = vadd.f32 %v810, %v914
        %v916 = vpop.f32.mrf.mxu0
        %917 = vmatprep.mubr.f32.mxu0 %v444
        %918 = vmatmul.mubr.f32.gmra.mxu0 %v347
        %v919 = vpop.f32.mrf.mxu0
        %v920 = vadd.f32 %v815, %v919
        %v921 = vpop.f32.mrf.mxu0
        %922 = vmatprep.mubr.f32.mxu0 %v447
        %923 = vmatmul.mubr.f32.gmra.mxu0 %v353
        %v924 = vpop.f32.mrf.mxu0
        %v925 = vadd.f32 %v820, %v924
        %v926 = vpop.f32.mrf.mxu0
        %927 = vdwg.mxu0
        %928 = vmatprep.subr.mxu0 0.0
        %929 = vmatpush1.msra.mxu0 %v573
        %930 = vmatprep.subr.mxu0 0.0
        %931 = vmatpush1.msra.mxu0 %v572
        %932 = vmatprep.subr.mxu0 0.0
        %933 = vmatpush1.msra.mxu0 %v571
        %934 = vmatprep.subr.mxu0 0.0
        %935 = vmatpush1.msra.mxu0 %v570
        %936 = vmatprep.subr.mxu0 0.0
        %937 = vmatpush1.msra.mxu0 %v569
        %938 = vmatprep.subr.mxu0 0.0
        %939 = vmatpush1.msra.mxu0 %v568
        %940 = vmatprep.subr.mxu0 0.0
        %941 = vmatpush1.msra.mxu0 %v567
        %942 = vmatprep.subr.mxu0 0.0
        %943 = vmatpush1.msra.mxu0 %v566
        %944 = vmatprep.subr.mxu0 0.0
        %945 = vmatpush1.msra.mxu0 %v565
        %946 = vmatprep.subr.mxu0 0.0
        %947 = vmatpush1.msra.mxu0 %v564
        %948 = vmatprep.subr.mxu0 0.0
        %949 = vmatpush1.msra.mxu0 %v563
        %950 = vmatprep.subr.mxu0 0.0
        %951 = vmatpush1.msra.mxu0 %v562
        %952 = vmatprep.subr.mxu0 0.0
        %953 = vmatpush1.msra.mxu0 %v561
        %954 = vmatprep.subr.mxu0 0.0
        %955 = vmatpush1.msra.mxu0 %v560
        %956 = vmatprep.subr.mxu0 0.0
        %957 = vmatpush1.msra.mxu0 %v559
        %958 = vmatprep.subr.mxu0 0.0
        %959 = vmatpush1.msra.mxu0 %v558
        %960 = vmatprep.subr.mxu0 0.0
        %961 = vmatpush2.msra.mxu0 %v589
        %962 = vmatprep.subr.mxu0 0.0
        %963 = vmatpush2.msra.mxu0 %v588
        %964 = vmatprep.subr.mxu0 0.0
        %965 = vmatpush2.msra.mxu0 %v587
        %966 = vmatprep.subr.mxu0 0.0
        %967 = vmatpush2.msra.mxu0 %v586
        %968 = vmatprep.subr.mxu0 0.0
        %969 = vmatpush2.msra.mxu0 %v585
        %970 = vmatprep.subr.mxu0 0.0
        %971 = vmatpush2.msra.mxu0 %v584
        %972 = vmatprep.subr.mxu0 0.0
        %973 = vmatpush2.msra.mxu0 %v583
        %974 = vmatprep.subr.mxu0 0.0
        %975 = vmatpush2.msra.mxu0 %v582
        %976 = vmatprep.subr.mxu0 0.0
        %977 = vmatpush2.msra.mxu0 %v581
        %978 = vmatprep.subr.mxu0 0.0
        %979 = vmatpush2.msra.mxu0 %v580
        %980 = vmatprep.subr.mxu0 0.0
        %981 = vmatpush2.msra.mxu0 %v579
        %982 = vmatprep.subr.mxu0 0.0
        %983 = vmatpush2.msra.mxu0 %v578
        %984 = vmatprep.subr.mxu0 0.0
        %985 = vmatpush2.msra.mxu0 %v577
        %986 = vmatprep.subr.mxu0 0.0
        %987 = vmatpush2.msra.mxu0 %v576
        %988 = vmatprep.subr.mxu0 0.0
        %989 = vmatpush2.msra.mxu0 %v575
        %990 = vmatprep.subr.mxu0 0.0
        %991 = vmatpush2.msra.mxu0 %v574
        %992 = vmatprep.mubr.f32.mxu0 %v315
        %993 = vmatmul.mubr.f32.gmra.mxu0 %v314
        %v994 = vpop.f32.mrf.mxu0
        %v995 = vadd.f32 %v890, %v994
        %v996 = vpop.f32.mrf.mxu0
        %997 = vmatprep.mubr.f32.mxu0 %v321
        %998 = vmatmul.mubr.f32.gmra.mxu0 %v320
        %v999 = vpop.f32.mrf.mxu0
        %v1000 = vadd.f32 %v895, %v999
        %v1001 = vpop.f32.mrf.mxu0
        %1002 = vmatprep.mubr.f32.mxu0 %v327
        %1003 = vmatmul.mubr.f32.gmra.mxu0 %v326
        %v1004 = vpop.f32.mrf.mxu0
        %v1005 = vadd.f32 %v900, %v1004
        %v1006 = vpop.f32.mrf.mxu0
        %1007 = vmatprep.mubr.f32.mxu0 %v333
        %1008 = vmatmul.mubr.f32.gmra.mxu0 %v332
        %v1009 = vpop.f32.mrf.mxu0
        %v1010 = vadd.f32 %v905, %v1009
        %v1011 = vpop.f32.mrf.mxu0
        %1012 = vmatprep.mubr.f32.mxu0 %v339
        %1013 = vmatmul.mubr.f32.gmra.mxu0 %v338
        %v1014 = vpop.f32.mrf.mxu0
        %v1015 = vadd.f32 %v910, %v1014
        %v1016 = vpop.f32.mrf.mxu0
        %1017 = vmatprep.mubr.f32.mxu0 %v345
        %1018 = vmatmul.mubr.f32.gmra.mxu0 %v344
        %v1019 = vpop.f32.mrf.mxu0
        %v1020 = vadd.f32 %v915, %v1019
        %v1021 = vpop.f32.mrf.mxu0
        %1022 = vmatprep.mubr.f32.mxu0 %v351
        %1023 = vmatmul.mubr.f32.gmra.mxu0 %v350
        %v1024 = vpop.f32.mrf.mxu0
        %v1025 = vadd.f32 %v920, %v1024
        %v1026 = vpop.f32.mrf.mxu0
        %1027 = vmatprep.mubr.f32.mxu0 %v357
        %1028 = vmatmul.mubr.f32.gmra.mxu0 %v356
        %v1029 = vpop.f32.mrf.mxu0
        %v1030 = vadd.f32 %v925, %v1029
        %v1031 = vpop.f32.mrf.mxu0
        %1032 = vdwg.mxu0
        %1033 = vmatprep.subr.mxu0 0.0
        %1034 = vmatpush1.msra.mxu0 %v605
        %1035 = vmatprep.subr.mxu0 0.0
        %1036 = vmatpush1.msra.mxu0 %v604
        %1037 = vmatprep.subr.mxu0 0.0
        %1038 = vmatpush1.msra.mxu0 %v603
        %1039 = vmatprep.subr.mxu0 0.0
        %1040 = vmatpush1.msra.mxu0 %v602
        %1041 = vmatprep.subr.mxu0 0.0
        %1042 = vmatpush1.msra.mxu0 %v601
        %1043 = vmatprep.subr.mxu0 0.0
        %1044 = vmatpush1.msra.mxu0 %v600
        %1045 = vmatprep.subr.mxu0 0.0
        %1046 = vmatpush1.msra.mxu0 %v599
        %1047 = vmatprep.subr.mxu0 0.0
        %1048 = vmatpush1.msra.mxu0 %v598
        %1049 = vmatprep.subr.mxu0 0.0
        %1050 = vmatpush1.msra.mxu0 %v597
        %1051 = vmatprep.subr.mxu0 0.0
        %1052 = vmatpush1.msra.mxu0 %v596
        %1053 = vmatprep.subr.mxu0 0.0
        %1054 = vmatpush1.msra.mxu0 %v595
        %1055 = vmatprep.subr.mxu0 0.0
        %1056 = vmatpush1.msra.mxu0 %v594
        %1057 = vmatprep.subr.mxu0 0.0
        %1058 = vmatpush1.msra.mxu0 %v593
        %1059 = vmatprep.subr.mxu0 0.0
        %1060 = vmatpush1.msra.mxu0 %v592
        %1061 = vmatprep.subr.mxu0 0.0
        %1062 = vmatpush1.msra.mxu0 %v591
        %1063 = vmatprep.subr.mxu0 0.0
        %1064 = vmatpush1.msra.mxu0 %v590
        %1065 = vmatprep.subr.mxu0 0.0
        %1066 = vmatpush2.msra.mxu0 0.0
        %1067 = vmatprep.subr.mxu0 0.0
        %1068 = vmatpush2.msra.mxu0 0.0
        %1069 = vmatprep.subr.mxu0 0.0
        %1070 = vmatpush2.msra.mxu0 0.0
        %1071 = vmatprep.subr.mxu0 0.0
        %1072 = vmatpush2.msra.mxu0 0.0
        %1073 = vmatprep.subr.mxu0 0.0
        %1074 = vmatpush2.msra.mxu0 0.0
        %1075 = vmatprep.subr.mxu0 0.0
        %1076 = vmatpush2.msra.mxu0 0.0
        %1077 = vmatprep.subr.mxu0 0.0
        %1078 = vmatpush2.msra.mxu0 0.0
        %1079 = vmatprep.subr.mxu0 0.0
        %1080 = vmatpush2.msra.mxu0 0.0
        %1081 = vmatprep.subr.mxu0 0.0
        %1082 = vmatpush2.msra.mxu0 0.0
        %1083 = vmatprep.subr.mxu0 0.0
        %1084 = vmatpush2.msra.mxu0 0.0
        %1085 = vmatprep.subr.mxu0 0.0
        %1086 = vmatpush2.msra.mxu0 0.0
        %1087 = vmatprep.subr.mxu0 0.0
        %1088 = vmatpush2.msra.mxu0 0.0
        %1089 = vmatprep.subr.mxu0 0.0
        %1090 = vmatpush2.msra.mxu0 0.0
        %1091 = vmatprep.subr.mxu0 0.0
        %1092 = vmatpush2.msra.mxu0 0.0
        %1093 = vmatprep.subr.mxu0 0.0
        %1094 = vmatpush2.msra.mxu0 0.0
        %1095 = vmatprep.subr.mxu0 0.0
        %1096 = vmatpush2.msra.mxu0 0.0
        %1097 = vmatprep.mubr.f32.mxu0 0.0
        %1098 = vmatmul.mubr.f32.gmra.mxu0 %v381
        %v1099 = vpop.f32.mrf.mxu0
        %v1100 = vadd.f32 %v995, %v1099
        %v1101 = vpop.f32.mrf.mxu0
        %1102 = vmatprep.mubr.f32.mxu0 0.0
        %1103 = vmatmul.mubr.f32.gmra.mxu0 %v384
        %v1104 = vpop.f32.mrf.mxu0
        %v1105 = vadd.f32 %v1000, %v1104
        %v1106 = vpop.f32.mrf.mxu0
        %1107 = vmatprep.mubr.f32.mxu0 0.0
        %1108 = vmatmul.mubr.f32.gmra.mxu0 %v387
        %v1109 = vpop.f32.mrf.mxu0
        %v1110 = vadd.f32 %v1005, %v1109
        %v1111 = vpop.f32.mrf.mxu0
        %1112 = vmatprep.mubr.f32.mxu0 0.0
        %1113 = vmatmul.mubr.f32.gmra.mxu0 %v390
        %v1114 = vpop.f32.mrf.mxu0
        %v1115 = vadd.f32 %v1010, %v1114
        %v1116 = vpop.f32.mrf.mxu0
        %1117 = vmatprep.mubr.f32.mxu0 0.0
        %1118 = vmatmul.mubr.f32.gmra.mxu0 %v393
        %v1119 = vpop.f32.mrf.mxu0
        %v1120 = vadd.f32 %v1015, %v1119
        %v1121 = vpop.f32.mrf.mxu0
        %1122 = vmatprep.mubr.f32.mxu0 0.0
        %1123 = vmatmul.mubr.f32.gmra.mxu0 %v396
        %v1124 = vpop.f32.mrf.mxu0
        %v1125 = vadd.f32 %v1020, %v1124
        %v1126 = vpop.f32.mrf.mxu0
        %1127 = vmatprep.mubr.f32.mxu0 0.0
        %1128 = vmatmul.mubr.f32.gmra.mxu0 %v399
        %v1129 = vpop.f32.mrf.mxu0
        %v1130 = vadd.f32 %v1025, %v1129
        %v1131 = vpop.f32.mrf.mxu0
        %1132 = vmatprep.mubr.f32.mxu0 0.0
        %1133 = vmatmul.mubr.f32.gmra.mxu0 %v460
        %v1134 = vpop.f32.mrf.mxu0
        %v1135 = vadd.f32 %v1030, %v1134
        %v1136 = vpop.f32.mrf.mxu0
        %1137 = vdwg.mxu0
        %vm1138 = vcmp.ge.f32.partialorder %v1100, 0.0
        %vm1139 = vcmp.ge.f32.partialorder %v1105, 0.0
        %vm1140 = vcmp.ge.f32.partialorder %v1110, 0.0
        %vm1141 = vcmp.ge.f32.partialorder %v1115, 0.0
        %vm1142 = vcmp.ge.f32.partialorder %v1120, 0.0
        %vm1143 = vcmp.ge.f32.partialorder %v1125, 0.0
        %vm1144 = vcmp.ge.f32.partialorder %v1130, 0.0
        %vm1145 = vcmp.ge.f32.partialorder %v1135, 0.0
        %v1146 = vmul.f32 %v1100, 0.01
        %v1147 = vmul.f32 %v1105, 0.01
        %v1148 = vmul.f32 %v1110, 0.01
        %v1149 = vmul.f32 %v1115, 0.01
        %v1150 = vmul.f32 %v1120, 0.01
        %v1151 = vmul.f32 %v1125, 0.01
        %v1152 = vmul.f32 %v1130, 0.01
        %v1153 = vmul.f32 %v1135, 0.01
        %v1154 = vsel %vm1138, %v1100, %v1146
        %v1155 = vsel %vm1139, %v1105, %v1147
        %v1156 = vsel %vm1140, %v1110, %v1148
        %v1157 = vsel %vm1141, %v1115, %v1149
        %v1158 = vsel %vm1142, %v1120, %v1150
        %v1159 = vsel %vm1143, %v1125, %v1151
        %v1160 = vsel %vm1144, %v1130, %v1152
        %v1161 = vsel %vm1145, %v1135, %v1153
        %1162 = vst [vmem:[%s270] sm:$0xff] %v1154
        %1163 = vst [vmem:[%s270 + $0x8] sm:$0xff] %v1155
        %1164 = vst [vmem:[%s270 + $0x10] sm:$0xff] %v1156
        %1165 = vst [vmem:[%s270 + $0x18] sm:$0xff] %v1157
        %1166 = vst [vmem:[%s270 + $0x20] sm:$0xff] %v1158
        %1167 = vst [vmem:[%s270 + $0x28] sm:$0xff] %v1159
        %1168 = vst [vmem:[%s270 + $0x30] sm:$0xff] %v1160
        %1169 = vst [vmem:[%s270 + $0x38] sm:$0xff] %v1161
        %s1170 = sand.u32 %s142, 1
        %s1171 = scalar_lea.sflag [#allocation3], %s1170
        %s1172 = sand.u32 %s142, 1
        %s1173 = smul.addr %s1172, 64
        %s1174 = scalar_lea.vmem [#allocation2], %s1173
        // Predicated region
        $region37: #{downsampling_forward.1} parent=35 // pred_check
          %p1175 = pneg %p152
        $region38: #{downsampling_forward.1} parent=35 // pred_check_branch
          %1177 = sbr.rel (%p1175) target = $region40
        $region39: #{downsampling_forward.1} parent=35 // pred_region
          %s1178 = smul.u32 8, %s23
          %s1180 = ssub.s32 1024, 1024
          %1181 = vsyncadd %s1171, %s1180
          %s1182 = smul.addr %s22, 8
          %s1183 = sadd.s32 %s1178, %s1182
          %s1184 = smul.addr %s1183, 128
          %s1185 = scalar_lea.hbm %s4, %s1184
          %s1186 = sshll.u32 %s1174, 4
          %s1187 = int_to_ptr.vmem [resolvable:$true] %s1186
          %1192 = dma.vmem_to_hbm [thread:$0]  %s1187, 1024, %s1185, %s1171, 128, 128, 8
        $region40: #{downsampling_forward.1} parent=35 // pred_fallthru
          _
      $region36: #{downsampling_forward.1} parent=5 // pred_fallthru
        _
      %p1193 = scmp.le.s32.totalorder 2, %s13
      // Predicated region
      $region41: #{downsampling_forward.1} parent=5 // pred_check
        %p1194 = pneg %p1193
      $region42: #{downsampling_forward.1} parent=5 // pred_check_branch
        %1196 = sbr.rel (%p1194) target = $region44
      $region43: #{downsampling_forward.1} parent=5 // pred_region
        %s1197 = ssub.s32 %s13, 2
        // Predicated region
        $region45: #{downsampling_forward.1} parent=43 // pred_check
          %p1198 = pneg %p158
        $region46: #{downsampling_forward.1} parent=43 // pred_check_branch
          %1200 = sbr.rel (%p1198) target = $region48
        $region47: #{downsampling_forward.1} parent=43 // pred_region
          %s1201 = sand.u32 %s143, 1
          %s1202 = scalar_lea.sflag [#allocation3], %s1201
          %s1203 = sand.u32 %s143, 1
          %s1204 = smul.addr %s1203, 64
          %s1205 = scalar_lea.vmem [#allocation2], %s1204
          %1206 = dma.done %s1202, 1024
        $region48: #{downsampling_forward.1} parent=43 // pred_fallthru
          _
      $region44: #{downsampling_forward.1} parent=5 // pred_fallthru
        _
    $region6: #{downsampling_forward.1} parent=1 // loop_footer
      %s17 = sadd.s32 1, %s13
    $region7: #{downsampling_forward.1} parent=1 // loop_footer_branch
      %12 = sbr.rel target = $region3
    $region8: #{downsampling_forward.1} parent=1 // loop_exit
      _
    %1207 = vsyncpa [#allocation3], 1
    %s1208 = scalar_lea.sflag [#allocation3], 1
    %1209 = vsyncpa %s1208, 1

// kernel: downsampling_forward.1
$region0: #{downsampling_forward.1}
  #allocation0 [shape = 'u32[]', space=smem, size = 0x4, offset = 0x4, fixed_abs, tag = 'smem constant byte address 0x4 - core index']
  #allocation1 [shape = 'u32[144,128]{1,0:T(1,128)}', space=vmem, size = 0x12000, scoped, tag = 'internal scratch']
  %s0 = inlined_call_operand.vmem [shape: f32[2,9,9,512], index: 0, kind: input, shape index: {}, may-alias: {0,1}]
  %s1 = inlined_call_operand.vmem [shape: f32[2,9,9,512], index: 1, kind: input, shape index: {}, may-alias: {0,1}]
  %s2 = inlined_call_operand.vmem [shape: f32[1152,128], index: 2, kind: input, shape index: {}]
  %s3 = inlined_call_operand.vmem [shape: f32[1,128], index: 3, kind: input, shape index: {}]
  %s4 = inlined_call_operand.hbm [shape: f32[2,8,8,128], index: 4, kind: output, shape index: {}]
  %s5 = sld [smem:[#allocation0]]
  $region49: #{downsampling_forward.1} parent=0
    _
  %s7 = ssub.s32 1, %s5
  %s8 = scalar_select 0, %s7, %s5
  $region1: #{downsampling_forward.1} parent=0
    #allocation2 [shape = 'u8[65536]{0}', space=vmem, size = 0x10000, scoped, tag = 'output window, operand 0']
    #allocation3 [shape = 's32[2]{0}', space=sflag, size = 0x8, scoped, tag = 'scoped memory for downsampling_forward.1']
    %9 = vsyncpa [#allocation3], 0
    %s10 = scalar_lea.sflag [#allocation3], 1
    %11 = vsyncpa %s10, 0
    loop: start=0, step=1, limit=4
    $region2: #{downsampling_forward.1} parent=1 // loop_pre_header
      _
    $region3: #{downsampling_forward.1} parent=1 // loop_header
      %s13 = sphi 0, %s17
      %p14 = scmp.ge.s32.totalorder %s13, 4
      %s20 = sphi 0, %s32
      %s21 = sphi 0, %s28
      %s22 = sphi 0, %s20
      %s23 = sphi 0, %s21
      %s24 = sphi 0, %s22
      %s25 = sphi 0, %s23
      %s37 = sphi 0, %s39
      %s40 = sphi 0, %s37
      %s41 = sphi 0, %s40
      %s57 = sphi 0, %s41
      %s69 = sphi 0, %s71
      %s72 = sphi 0, %s69
      %s73 = sphi 0, %s72
      %s89 = sphi 0, %s73
      %s93 = sphi 0, %s93
      %s95 = sphi 0, %s93
      %s96 = sphi 0, %s95
      %s110 = sphi 0, %s96
      %s114 = sphi 0, %s114
      %s116 = sphi 0, %s114
      %s117 = sphi 0, %s116
      %s131 = sphi 0, %s117
      %s139 = sphi 0, %s141
      %s142 = sphi 0, %s139
      %s143 = sphi 0, %s142
      %s159 = sphi 0, %s143
    $region4: #{downsampling_forward.1} parent=1 // loop_header_branch
      %16 = sbr.rel (%p14) target = $region8
    $region5: #{downsampling_forward.1} parent=1 // loop_body
      %s18 = ssub.s32 %s13, 1
      %s19 = ssub.s32 %s13, 2
      %s26 = sadd.s32 1, %s21
      %p27 = scmp.ge.s32.totalorder %s26, 1
      %s28 = scalar_select %p27, 0, %s26
      %s29 = sadd.s32 1, %s20
      %s30 = scalar_select %p27, %s29, %s20
      %p31 = scmp.ge.s32.totalorder %s30, 2
      %s32 = scalar_select %p31, 0, %s30
      %s33 = ssub.s32 %s20, %s32
      %s34 = ssub.s32 %s21, %s28
      %s35 = sor.u32 %s33, %s34
      %p36 = scmp.eq.s32.totalorder %s35, 0
      %s38 = sadd.s32 %s37, 1
      %s39 = scalar_select %p36, %s37, %s38
      %p42 = pneg %p36
      %p43 = scmp.eq.s32.totalorder %s13, 1
      %p44 = por %p42, %p43
      %p45 = scmp.ne.s32.totalorder %s37, %s40
      %p46 = scmp.eq.s32.totalorder %s13, 0
      %p47 = por %p45, %p46
      %p48 = scmp.ne.s32.totalorder %s37, %s40
      %p49 = scmp.eq.s32.totalorder %s18, 1
      %p50 = por %p48, %p49
      %p51 = scmp.ne.s32.totalorder %s40, %s41
      %p52 = scmp.eq.s32.totalorder %s18, 0
      %p53 = por %p51, %p52
      %p54 = scmp.ne.s32.totalorder %s40, %s41
      %p55 = scmp.eq.s32.totalorder %s19, 1
      %p56 = por %p54, %p55
      %p58 = scmp.ne.s32.totalorder %s41, %s57
      %p59 = scmp.eq.s32.totalorder %s19, 0
      %p60 = por %p58, %p59
      %s61 = sadd.s32 %s21, 1
      %s62 = smul.u32 %s61, 8
      %s63 = sadd.s32 %s28, 1
      %s64 = smul.u32 %s63, 8
      %s65 = ssub.s32 %s20, %s32
      %s66 = ssub.s32 %s62, %s64
      %s67 = sor.u32 %s65, %s66
      %p68 = scmp.eq.s32.totalorder %s67, 0
      %s70 = sadd.s32 %s69, 1
      %s71 = scalar_select %p68, %s69, %s70
      %p74 = pneg %p68
      %p75 = scmp.eq.s32.totalorder %s13, 1
      %p76 = por %p74, %p75
      %p77 = scmp.ne.s32.totalorder %s69, %s72
      %p78 = scmp.eq.s32.totalorder %s13, 0
      %p79 = por %p77, %p78
      %p80 = scmp.ne.s32.totalorder %s69, %s72
      %p81 = scmp.eq.s32.totalorder %s18, 1
      %p82 = por %p80, %p81
      %p83 = scmp.ne.s32.totalorder %s72, %s73
      %p84 = scmp.eq.s32.totalorder %s18, 0
      %p85 = por %p83, %p84
      %p86 = scmp.ne.s32.totalorder %s72, %s73
      %p87 = scmp.eq.s32.totalorder %s19, 1
      %p88 = por %p86, %p87
      %p90 = scmp.ne.s32.totalorder %s73, %s89
      %p91 = scmp.eq.s32.totalorder %s19, 0
      %p92 = por %p90, %p91
      %s94 = sadd.s32 %s93, 1
      %p97 = scmp.eq.s32.totalorder %s13, 1
      %p98 = scmp.ne.s32.totalorder %s93, %s95
      %p99 = scmp.eq.s32.totalorder %s13, 0
      %p100 = por %p98, %p99
      %p101 = scmp.ne.s32.totalorder %s93, %s95
      %p102 = scmp.eq.s32.totalorder %s18, 1
      %p103 = por %p101, %p102
      %p104 = scmp.ne.s32.totalorder %s95, %s96
      %p105 = scmp.eq.s32.totalorder %s18, 0
      %p106 = por %p104, %p105
      %p107 = scmp.ne.s32.totalorder %s95, %s96
      %p108 = scmp.eq.s32.totalorder %s19, 1
      %p109 = por %p107, %p108
      %p111 = scmp.ne.s32.totalorder %s96, %s110
      %p112 = scmp.eq.s32.totalorder %s19, 0
      %p113 = por %p111, %p112
      %s115 = sadd.s32 %s114, 1
      %p118 = scmp.eq.s32.totalorder %s13, 1
      %p119 = scmp.ne.s32.totalorder %s114, %s116
      %p120 = scmp.eq.s32.totalorder %s13, 0
      %p121 = por %p119, %p120
      %p122 = scmp.ne.s32.totalorder %s114, %s116
      %p123 = scmp.eq.s32.totalorder %s18, 1
      %p124 = por %p122, %p123
      %p125 = scmp.ne.s32.totalorder %s116, %s117
      %p126 = scmp.eq.s32.totalorder %s18, 0
      %p127 = por %p125, %p126
      %p128 = scmp.ne.s32.totalorder %s116, %s117
      %p129 = scmp.eq.s32.totalorder %s19, 1
      %p130 = por %p128, %p129
      %p132 = scmp.ne.s32.totalorder %s117, %s131
      %p133 = scmp.eq.s32.totalorder %s19, 0
      %p134 = por %p132, %p133
      %s135 = ssub.s32 %s20, %s32
      %s136 = ssub.s32 %s21, %s28
      %s137 = sor.u32 %s135, %s136
      %p138 = scmp.eq.s32.totalorder %s137, 0
      %s140 = sadd.s32 %s139, 1
      %s141 = scalar_select %p138, %s139, %s140
      %p144 = pneg %p138
      %p145 = scmp.eq.s32.totalorder %s13, 1
      %p146 = por %p144, %p145
      %p147 = scmp.ne.s32.totalorder %s139, %s142
      %p148 = scmp.eq.s32.totalorder %s13, 0
      %p149 = por %p147, %p148
      %p150 = scmp.ne.s32.totalorder %s139, %s142
      %p151 = scmp.eq.s32.totalorder %s18, 1
      %p152 = por %p150, %p151
      %p153 = scmp.ne.s32.totalorder %s142, %s143
      %p154 = scmp.eq.s32.totalorder %s18, 0
      %p155 = por %p153, %p154
      %p156 = scmp.ne.s32.totalorder %s142, %s143
      %p157 = scmp.eq.s32.totalorder %s19, 1
      %p158 = por %p156, %p157
      %p160 = scmp.ne.s32.totalorder %s143, %s159
      %p161 = scmp.eq.s32.totalorder %s19, 0
      %p162 = por %p160, %p161
      %p163 = scmp.le.s32.totalorder 1, %s13
      %p164 = scmp.lt.s32.totalorder %s13, 3
      %p165 = pnand %p163, %p164
      %p166 = pneg %p165
      // Predicated region
      $region9: #{downsampling_forward.1} parent=5 // pred_check
        _
      $region10: #{downsampling_forward.1} parent=5 // pred_check_branch
        %168 = sbr.rel (%p165) target = $region12
      $region11: #{downsampling_forward.1} parent=5 // pred_region
        %s169 = ssub.s32 %s13, 1
        // Predicated region
        $region13: #{downsampling_forward.1} parent=11 // pred_check
          %p170 = pneg %p106
        $region14: #{downsampling_forward.1} parent=11 // pred_check_branch
          %172 = sbr.rel (%p170) target = $region16
        $region15: #{downsampling_forward.1} parent=11 // pred_region
          _
        $region16: #{downsampling_forward.1} parent=11 // pred_fallthru
          _
        // Predicated region
        $region17: #{downsampling_forward.1} parent=11 // pred_check
          %p173 = pneg %p127
        $region18: #{downsampling_forward.1} parent=11 // pred_check_branch
          %175 = sbr.rel (%p173) target = $region20
        $region19: #{downsampling_forward.1} parent=11 // pred_region
          _
        $region20: #{downsampling_forward.1} parent=11 // pred_fallthru
          _
      $region12: #{downsampling_forward.1} parent=5 // pred_fallthru
        _
      %p176 = scmp.lt.s32.totalorder %s13, 2
      // Predicated region
      $region21: #{downsampling_forward.1} parent=5 // pred_check
        %p177 = pneg %p176
      $region22: #{downsampling_forward.1} parent=5 // pred_check_branch
        %179 = sbr.rel (%p177) target = $region24
      $region23: #{downsampling_forward.1} parent=5 // pred_region
        // Predicated region
        $region25: #{downsampling_forward.1} parent=23 // pred_check
          %p180 = pneg %p47
        $region26: #{downsampling_forward.1} parent=23 // pred_check_branch
          %182 = sbr.rel (%p180) target = $region28
        $region27: #{downsampling_forward.1} parent=23 // pred_region
          %s183 = smul.u32 8, %s21
          %s184 = ssub.s32 9, %s183
          %p185 = scmp.lt.s32.totalorder %s184, 8
          %s186 = scalar_select %p185, %s184, 8
          %s187 = smul.u32 128, %s186
          %s188 = smul.u32 %s187, 2
          %s189 = smul.u32 %s188, 4
          %p190 = scmp.lt.s32.totalorder %s20, 1
          %s191 = scalar_select %p190, %s20, 1
          %p192 = scmp.lt.s32.totalorder %s183, 8
          %s193 = scalar_select %p192, %s183, 8
          %s194 = smul.addr %s193, 8
          %s195 = smul.addr %s191, 72
          %s196 = sadd.s32 %s194, %s195
          %s197 = smul.addr %s196, 8
          %s198 = scalar_lea.vmem %s0, %s197
          %s199 = smul.u32 8, %s21
          %s200 = ssub.s32 9, %s199
          %p201 = scmp.lt.s32.totalorder %s200, 8
          %s202 = scalar_select %p201, %s200, 8
          %s203 = smul.u32 128, %s202
          %s204 = smul.u32 %s203, 2
          %s205 = smul.u32 %s204, 4
        $region28: #{downsampling_forward.1} parent=23 // pred_fallthru
          _
        // Predicated region
        $region29: #{downsampling_forward.1} parent=23 // pred_check
          %p206 = pneg %p79
        $region30: #{downsampling_forward.1} parent=23 // pred_check_branch
          %208 = sbr.rel (%p206) target = $region32
        $region31: #{downsampling_forward.1} parent=23 // pred_region
          %s209 = sadd.s32 %s21, 1
          %s210 = smul.u32 %s209, 8
          %p211 = scmp.lt.s32.totalorder %s20, 1
          %s212 = scalar_select %p211, %s20, 1
          %p213 = scmp.lt.s32.totalorder %s210, 8
          %s214 = scalar_select %p213, %s210, 8
          %s215 = smul.addr %s214, 8
          %s216 = smul.addr %s212, 72
          %s217 = sadd.s32 %s215, %s216
          %s218 = smul.addr %s217, 8
          %s219 = scalar_lea.vmem %s1, %s218
          %s220 = sadd.s32 %s21, 1
          %s221 = smul.u32 %s220, 8
        $region32: #{downsampling_forward.1} parent=23 // pred_fallthru
          _
      $region24: #{downsampling_forward.1} parent=5 // pred_fallthru
        _
      %p222 = scmp.le.s32.totalorder 1, %s13
      %p223 = scmp.lt.s32.totalorder %s13, 3
      %p224 = pnand %p222, %p223
      %p225 = pneg %p224
      // Predicated region
      $region33: #{downsampling_forward.1} parent=5 // pred_check
        _
      $region34: #{downsampling_forward.1} parent=5 // pred_check_branch
        %227 = sbr.rel (%p224) target = $region36
      $region35: #{downsampling_forward.1} parent=5 // pred_region
        %s228 = ssub.s32 %s13, 1
        %s229 = smul.u32 8, %s23
        %s230 = ssub.s32 9, %s229
        %p231 = scmp.lt.s32.totalorder %s230, 8
        %s232 = scalar_select %p231, %s230, 8
        %s233 = smul.u32 128, %s232
        %s234 = smul.u32 %s233, 2
        %s235 = smul.u32 %s234, 4
        %p236 = scmp.lt.s32.totalorder %s22, 1
        %s237 = scalar_select %p236, %s22, 1
        %p238 = scmp.lt.s32.totalorder %s229, 8
        %s239 = scalar_select %p238, %s229, 8
        %s240 = smul.addr %s239, 8
        %s241 = smul.addr %s237, 72
        %s242 = sadd.s32 %s240, %s241
        %s243 = smul.addr %s242, 8
        %s244 = scalar_lea.vmem %s0, %s243
        %p245 = pneg %p53
        %p246 = pneg %p50
        %s247 = sadd.s32 %s23, 1
        %s248 = smul.u32 %s247, 8
        %p249 = scmp.lt.s32.totalorder %s22, 1
        %s250 = scalar_select %p249, %s22, 1
        %p251 = scmp.lt.s32.totalorder %s248, 8
        %s252 = scalar_select %p251, %s248, 8
        %s253 = smul.addr %s252, 8
        %s254 = smul.addr %s250, 72
        %s255 = sadd.s32 %s253, %s254
        %s256 = smul.addr %s255, 8
        %s257 = scalar_lea.vmem %s1, %s256
        %p258 = pneg %p85
        %p259 = pneg %p82
        %p260 = pneg %p106
        %p261 = pneg %p103
        %p262 = pneg %p127
        %p263 = pneg %p124
        %p264 = pneg %p155
        %p265 = pneg %p152
        %s266 = sand.u32 %s142, 1
        %s267 = scalar_lea.sflag [#allocation3], %s266
        %s268 = sand.u32 %s142, 1
        %s269 = smul.addr %s268, 64
        %s270 = scalar_lea.vmem [#allocation2], %s269
        %s271 = smul.u32 8, %s23
        %s272 = ssub.s32 9, %s271
        %p273 = scmp.lt.s32.totalorder %s272, 8
        %s274 = scalar_select %p273, %s272, 8
        %s275 = smul.u32 128, %s274
        %s276 = smul.u32 %s275, 2
        %s277 = smul.u32 %s276, 4
        %p278 = scmp.lt.s32.totalorder %s22, 1
        %s279 = scalar_select %p278, %s22, 1
        %p280 = scmp.lt.s32.totalorder %s271, 8
        %s281 = scalar_select %p280, %s271, 8
        %s282 = smul.addr %s281, 8
        %s283 = smul.addr %s279, 72
        %s284 = sadd.s32 %s282, %s283
        %s285 = smul.addr %s284, 8
        %s286 = scalar_lea.vmem %s0, %s285
        %s287 = smul.u32 8, %s23
        %s288 = ssub.s32 9, %s287
        %p289 = scmp.lt.s32.totalorder %s288, 8
        %s290 = scalar_select %p289, %s288, 8
        %s291 = smul.u32 128, %s290
        %s292 = smul.u32 %s291, 2
        %s293 = smul.u32 %s292, 4
        %s294 = sadd.s32 %s23, 1
        %s295 = smul.u32 %s294, 8
        %p296 = scmp.lt.s32.totalorder %s22, 1
        %s297 = scalar_select %p296, %s22, 1
        %p298 = scmp.lt.s32.totalorder %s295, 8
        %s299 = scalar_select %p298, %s295, 8
        %s300 = smul.addr %s299, 8
        %s301 = smul.addr %s297, 72
        %s302 = sadd.s32 %s300, %s301
        %s303 = smul.addr %s302, 8
        %s304 = scalar_lea.vmem %s1, %s303
        %s305 = sadd.s32 %s23, 1
        %s306 = smul.u32 %s305, 8
        %s307 = smul.u32 8, %s23
        %v308 = vld [vmem:[%s286] sm:$0xff]
        %v309 = vld [vmem:[%s286 + $0x8] sm:$0xff]
        %v310 = vld [vmem:[%s286 + $0x10] sm:$0xff]
        %v311 = vld [vmem:[%s286 + $0x18] sm:$0xff]
        %v312 = vld [vmem:[%s286 + $0x20] sm:$0x1]
        %v313 = vld [vmem:[%s286 + $0x30] sm:$0x1]
        %v314 = vld [vmem:[%s286 + $0x40] sm:$0xff]
        %v315 = vld [vmem:[%s286 + $0x48] sm:$0xff]
        %v316 = vld [vmem:[%s286 + $0x50] sm:$0xff]
        %v317 = vld [vmem:[%s286 + $0x58] sm:$0xff]
        %v318 = vld [vmem:[%s286 + $0x60] sm:$0x1]
        %v319 = vld [vmem:[%s286 + $0x70] sm:$0x1]
        %v320 = vld [vmem:[%s286 + $0x80] sm:$0xff]
        %v321 = vld [vmem:[%s286 + $0x88] sm:$0xff]
        %v322 = vld [vmem:[%s286 + $0x90] sm:$0xff]
        %v323 = vld [vmem:[%s286 + $0x98] sm:$0xff]
        %v324 = vld [vmem:[%s286 + $0xa0] sm:$0x1]
        %v325 = vld [vmem:[%s286 + $0xb0] sm:$0x1]
        %v326 = vld [vmem:[%s286 + $0xc0] sm:$0xff]
        %v327 = vld [vmem:[%s286 + $0xc8] sm:$0xff]
        %v328 = vld [vmem:[%s286 + $0xd0] sm:$0xff]
        %v329 = vld [vmem:[%s286 + $0xd8] sm:$0xff]
        %v330 = vld [vmem:[%s286 + $0xe0] sm:$0x1]
        %v331 = vld [vmem:[%s286 + $0xf0] sm:$0x1]
        %v332 = vld [vmem:[%s286 + $0x100] sm:$0xff]
        %v333 = vld [vmem:[%s286 + $0x108] sm:$0xff]
        %v334 = vld [vmem:[%s286 + $0x110] sm:$0xff]
        %v335 = vld [vmem:[%s286 + $0x118] sm:$0xff]
        %v336 = vld [vmem:[%s286 + $0x120] sm:$0x1]
        %v337 = vld [vmem:[%s286 + $0x130] sm:$0x1]
        %v338 = vld [vmem:[%s286 + $0x140] sm:$0xff]
        %v339 = vld [vmem:[%s286 + $0x148] sm:$0xff]
        %v340 = vld [vmem:[%s286 + $0x150] sm:$0xff]
        %v341 = vld [vmem:[%s286 + $0x158] sm:$0xff]
        %v342 = vld [vmem:[%s286 + $0x160] sm:$0x1]
        %v343 = vld [vmem:[%s286 + $0x170] sm:$0x1]
        %v344 = vld [vmem:[%s286 + $0x180] sm:$0xff]
        %v345 = vld [vmem:[%s286 + $0x188] sm:$0xff]
        %v346 = vld [vmem:[%s286 + $0x190] sm:$0xff]
        %v347 = vld [vmem:[%s286 + $0x198] sm:$0xff]
        %v348 = vld [vmem:[%s286 + $0x1a0] sm:$0x1]
        %v349 = vld [vmem:[%s286 + $0x1b0] sm:$0x1]
        %v350 = vld [vmem:[%s286 + $0x1c0] sm:$0xff]
        %v351 = vld [vmem:[%s286 + $0x1c8] sm:$0xff]
        %v352 = vld [vmem:[%s286 + $0x1d0] sm:$0xff]
        %v353 = vld [vmem:[%s286 + $0x1d8] sm:$0xff]
        %v354 = vld [vmem:[%s286 + $0x1e0] sm:$0x1]
        %v355 = vld [vmem:[%s286 + $0x1f0] sm:$0x1]
        %v356 = vld [vmem:[%s304] sm:$0xff]
        %v357 = vld [vmem:[%s304 + $0x8] sm:$0xff]
        %v358 = vld [vmem:[%s304 + $0x20] sm:$0x1]
        %vm375 = vcmask 1046528
        %v376 = vrot.slane %v308, 1
        %v377 = vrot.slane %v312, 1
        %v378 = vsel %vm375, %v376, %v377
        %v379 = vrot.slane %v314, 1
        %v380 = vrot.slane %v318, 1
        %v381 = vsel %vm375, %v379, %v380
        %v382 = vrot.slane %v320, 1
        %v383 = vrot.slane %v324, 1
        %v384 = vsel %vm375, %v382, %v383
        %v385 = vrot.slane %v326, 1
        %v386 = vrot.slane %v330, 1
        %v387 = vsel %vm375, %v385, %v386
        %v388 = vrot.slane %v332, 1
        %v389 = vrot.slane %v336, 1
        %v390 = vsel %vm375, %v388, %v389
        %v391 = vrot.slane %v338, 1
        %v392 = vrot.slane %v342, 1
        %v393 = vsel %vm375, %v391, %v392
        %v394 = vrot.slane %v344, 1
        %v395 = vrot.slane %v348, 1
        %v396 = vsel %vm375, %v394, %v395
        %v397 = vrot.slane %v350, 1
        %v398 = vrot.slane %v354, 1
        %v399 = vsel %vm375, %v397, %v398
        %v424 = vrot.slane %v310, 1
        %v425 = vrot.slane %v313, 1
        %v426 = vsel %vm375, %v424, %v425
        %v427 = vrot.slane %v316, 1
        %v428 = vrot.slane %v319, 1
        %v429 = vsel %vm375, %v427, %v428
        %v430 = vrot.slane %v322, 1
        %v431 = vrot.slane %v325, 1
        %v432 = vsel %vm375, %v430, %v431
        %v433 = vrot.slane %v328, 1
        %v434 = vrot.slane %v331, 1
        %v435 = vsel %vm375, %v433, %v434
        %v436 = vrot.slane %v334, 1
        %v437 = vrot.slane %v337, 1
        %v438 = vsel %vm375, %v436, %v437
        %v439 = vrot.slane %v340, 1
        %v440 = vrot.slane %v343, 1
        %v441 = vsel %vm375, %v439, %v440
        %v442 = vrot.slane %v346, 1
        %v443 = vrot.slane %v349, 1
        %v444 = vsel %vm375, %v442, %v443
        %v445 = vrot.slane %v352, 1
        %v446 = vrot.slane %v355, 1
        %v447 = vsel %vm375, %v445, %v446
        %v458 = vrot.slane %v356, 1
        %v459 = vrot.slane %v358, 1
        %v460 = vsel %vm375, %v458, %v459
        %v462 = vld [vmem:[%s2] sm:$0xff]
        %v463 = vld [vmem:[%s2 + $0x8] sm:$0xff]
        %v464 = vld [vmem:[%s2 + $0x10] sm:$0xff]
        %v465 = vld [vmem:[%s2 + $0x18] sm:$0xff]
        %v466 = vld [vmem:[%s2 + $0x20] sm:$0xff]
        %v467 = vld [vmem:[%s2 + $0x28] sm:$0xff]
        %v468 = vld [vmem:[%s2 + $0x30] sm:$0xff]
        %v469 = vld [vmem:[%s2 + $0x38] sm:$0xff]
        %v470 = vld [vmem:[%s2 + $0x40] sm:$0xff]
        %v471 = vld [vmem:[%s2 + $0x48] sm:$0xff]
        %v472 = vld [vmem:[%s2 + $0x50] sm:$0xff]
        %v473 = vld [vmem:[%s2 + $0x58] sm:$0xff]
        %v474 = vld [vmem:[%s2 + $0x60] sm:$0xff]
        %v475 = vld [vmem:[%s2 + $0x68] sm:$0xff]
        %v476 = vld [vmem:[%s2 + $0x70] sm:$0xff]
        %v477 = vld [vmem:[%s2 + $0x78] sm:$0xff]
        %v478 = vld [vmem:[%s2 + $0x80] sm:$0xff]
        %v479 = vld [vmem:[%s2 + $0x88] sm:$0xff]
        %v480 = vld [vmem:[%s2 + $0x90] sm:$0xff]
        %v481 = vld [vmem:[%s2 + $0x98] sm:$0xff]
        %v482 = vld [vmem:[%s2 + $0xa0] sm:$0xff]
        %v483 = vld [vmem:[%s2 + $0xa8] sm:$0xff]
        %v484 = vld [vmem:[%s2 + $0xb0] sm:$0xff]
        %v485 = vld [vmem:[%s2 + $0xb8] sm:$0xff]
        %v486 = vld [vmem:[%s2 + $0xc0] sm:$0xff]
        %v487 = vld [vmem:[%s2 + $0xc8] sm:$0xff]
        %v488 = vld [vmem:[%s2 + $0xd0] sm:$0xff]
        %v489 = vld [vmem:[%s2 + $0xd8] sm:$0xff]
        %v490 = vld [vmem:[%s2 + $0xe0] sm:$0xff]
        %v491 = vld [vmem:[%s2 + $0xe8] sm:$0xff]
        %v492 = vld [vmem:[%s2 + $0xf0] sm:$0xff]
        %v493 = vld [vmem:[%s2 + $0xf8] sm:$0xff]
        %v494 = vld [vmem:[%s2 + $0x100] sm:$0xff]
        %v495 = vld [vmem:[%s2 + $0x108] sm:$0xff]
        %v496 = vld [vmem:[%s2 + $0x110] sm:$0xff]
        %v497 = vld [vmem:[%s2 + $0x118] sm:$0xff]
        %v498 = vld [vmem:[%s2 + $0x120] sm:$0xff]
        %v499 = vld [vmem:[%s2 + $0x128] sm:$0xff]
        %v500 = vld [vmem:[%s2 + $0x130] sm:$0xff]
        %v501 = vld [vmem:[%s2 + $0x138] sm:$0xff]
        %v502 = vld [vmem:[%s2 + $0x140] sm:$0xff]
        %v503 = vld [vmem:[%s2 + $0x148] sm:$0xff]
        %v504 = vld [vmem:[%s2 + $0x150] sm:$0xff]
        %v505 = vld [vmem:[%s2 + $0x158] sm:$0xff]
        %v506 = vld [vmem:[%s2 + $0x160] sm:$0xff]
        %v507 = vld [vmem:[%s2 + $0x168] sm:$0xff]
        %v508 = vld [vmem:[%s2 + $0x170] sm:$0xff]
        %v509 = vld [vmem:[%s2 + $0x178] sm:$0xff]
        %v510 = vld [vmem:[%s2 + $0x180] sm:$0xff]
        %v511 = vld [vmem:[%s2 + $0x188] sm:$0xff]
        %v512 = vld [vmem:[%s2 + $0x190] sm:$0xff]
        %v513 = vld [vmem:[%s2 + $0x198] sm:$0xff]
        %v514 = vld [vmem:[%s2 + $0x1a0] sm:$0xff]
        %v515 = vld [vmem:[%s2 + $0x1a8] sm:$0xff]
        %v516 = vld [vmem:[%s2 + $0x1b0] sm:$0xff]
        %v517 = vld [vmem:[%s2 + $0x1b8] sm:$0xff]
        %v518 = vld [vmem:[%s2 + $0x1c0] sm:$0xff]
        %v519 = vld [vmem:[%s2 + $0x1c8] sm:$0xff]
        %v520 = vld [vmem:[%s2 + $0x1d0] sm:$0xff]
        %v521 = vld [vmem:[%s2 + $0x1d8] sm:$0xff]
        %v522 = vld [vmem:[%s2 + $0x1e0] sm:$0xff]
        %v523 = vld [vmem:[%s2 + $0x1e8] sm:$0xff]
        %v524 = vld [vmem:[%s2 + $0x1f0] sm:$0xff]
        %v525 = vld [vmem:[%s2 + $0x1f8] sm:$0xff]
        %v526 = vld [vmem:[%s2 + $0x200] sm:$0xff]
        %v527 = vld [vmem:[%s2 + $0x208] sm:$0xff]
        %v528 = vld [vmem:[%s2 + $0x210] sm:$0xff]
        %v529 = vld [vmem:[%s2 + $0x218] sm:$0xff]
        %v530 = vld [vmem:[%s2 + $0x220] sm:$0xff]
        %v531 = vld [vmem:[%s2 + $0x228] sm:$0xff]
        %v532 = vld [vmem:[%s2 + $0x230] sm:$0xff]
        %v533 = vld [vmem:[%s2 + $0x238] sm:$0xff]
        %v534 = vld [vmem:[%s2 + $0x240] sm:$0xff]
        %v535 = vld [vmem:[%s2 + $0x248] sm:$0xff]
        %v536 = vld [vmem:[%s2 + $0x250] sm:$0xff]
        %v537 = vld [vmem:[%s2 + $0x258] sm:$0xff]
        %v538 = vld [vmem:[%s2 + $0x260] sm:$0xff]
        %v539 = vld [vmem:[%s2 + $0x268] sm:$0xff]
        %v540 = vld [vmem:[%s2 + $0x270] sm:$0xff]
        %v541 = vld [vmem:[%s2 + $0x278] sm:$0xff]
        %v542 = vld [vmem:[%s2 + $0x280] sm:$0xff]
        %v543 = vld [vmem:[%s2 + $0x288] sm:$0xff]
        %v544 = vld [vmem:[%s2 + $0x290] sm:$0xff]
        %v545 = vld [vmem:[%s2 + $0x298] sm:$0xff]
        %v546 = vld [vmem:[%s2 + $0x2a0] sm:$0xff]
        %v547 = vld [vmem:[%s2 + $0x2a8] sm:$0xff]
        %v548 = vld [vmem:[%s2 + $0x2b0] sm:$0xff]
        %v549 = vld [vmem:[%s2 + $0x2b8] sm:$0xff]
        %v550 = vld [vmem:[%s2 + $0x2c0] sm:$0xff]
        %v551 = vld [vmem:[%s2 + $0x2c8] sm:$0xff]
        %v552 = vld [vmem:[%s2 + $0x2d0] sm:$0xff]
        %v553 = vld [vmem:[%s2 + $0x2d8] sm:$0xff]
        %v554 = vld [vmem:[%s2 + $0x2e0] sm:$0xff]
        %v555 = vld [vmem:[%s2 + $0x2e8] sm:$0xff]
        %v556 = vld [vmem:[%s2 + $0x2f0] sm:$0xff]
        %v557 = vld [vmem:[%s2 + $0x2f8] sm:$0xff]
        %v558 = vld [vmem:[%s2 + $0x300] sm:$0xff]
        %v559 = vld [vmem:[%s2 + $0x308] sm:$0xff]
        %v560 = vld [vmem:[%s2 + $0x310] sm:$0xff]
        %v561 = vld [vmem:[%s2 + $0x318] sm:$0xff]
        %v562 = vld [vmem:[%s2 + $0x320] sm:$0xff]
        %v563 = vld [vmem:[%s2 + $0x328] sm:$0xff]
        %v564 = vld [vmem:[%s2 + $0x330] sm:$0xff]
        %v565 = vld [vmem:[%s2 + $0x338] sm:$0xff]
        %v566 = vld [vmem:[%s2 + $0x340] sm:$0xff]
        %v567 = vld [vmem:[%s2 + $0x348] sm:$0xff]
        %v568 = vld [vmem:[%s2 + $0x350] sm:$0xff]
        %v569 = vld [vmem:[%s2 + $0x358] sm:$0xff]
        %v570 = vld [vmem:[%s2 + $0x360] sm:$0xff]
        %v571 = vld [vmem:[%s2 + $0x368] sm:$0xff]
        %v572 = vld [vmem:[%s2 + $0x370] sm:$0xff]
        %v573 = vld [vmem:[%s2 + $0x378] sm:$0xff]
        %v574 = vld [vmem:[%s2 + $0x380] sm:$0xff]
        %v575 = vld [vmem:[%s2 + $0x388] sm:$0xff]
        %v576 = vld [vmem:[%s2 + $0x390] sm:$0xff]
        %v577 = vld [vmem:[%s2 + $0x398] sm:$0xff]
        %v578 = vld [vmem:[%s2 + $0x3a0] sm:$0xff]
        %v579 = vld [vmem:[%s2 + $0x3a8] sm:$0xff]
        %v580 = vld [vmem:[%s2 + $0x3b0] sm:$0xff]
        %v581 = vld [vmem:[%s2 + $0x3b8] sm:$0xff]
        %v582 = vld [vmem:[%s2 + $0x3c0] sm:$0xff]
        %v583 = vld [vmem:[%s2 + $0x3c8] sm:$0xff]
        %v584 = vld [vmem:[%s2 + $0x3d0] sm:$0xff]
        %v585 = vld [vmem:[%s2 + $0x3d8] sm:$0xff]
        %v586 = vld [vmem:[%s2 + $0x3e0] sm:$0xff]
        %v587 = vld [vmem:[%s2 + $0x3e8] sm:$0xff]
        %v588 = vld [vmem:[%s2 + $0x3f0] sm:$0xff]
        %v589 = vld [vmem:[%s2 + $0x3f8] sm:$0xff]
        %v590 = vld [vmem:[%s2 + $0x400] sm:$0xff]
        %v591 = vld [vmem:[%s2 + $0x408] sm:$0xff]
        %v592 = vld [vmem:[%s2 + $0x410] sm:$0xff]
        %v593 = vld [vmem:[%s2 + $0x418] sm:$0xff]
        %v594 = vld [vmem:[%s2 + $0x420] sm:$0xff]
        %v595 = vld [vmem:[%s2 + $0x428] sm:$0xff]
        %v596 = vld [vmem:[%s2 + $0x430] sm:$0xff]
        %v597 = vld [vmem:[%s2 + $0x438] sm:$0xff]
        %v598 = vld [vmem:[%s2 + $0x440] sm:$0xff]
        %v599 = vld [vmem:[%s2 + $0x448] sm:$0xff]
        %v600 = vld [vmem:[%s2 + $0x450] sm:$0xff]
        %v601 = vld [vmem:[%s2 + $0x458] sm:$0xff]
        %v602 = vld [vmem:[%s2 + $0x460] sm:$0xff]
        %v603 = vld [vmem:[%s2 + $0x468] sm:$0xff]
        %v604 = vld [vmem:[%s2 + $0x470] sm:$0xff]
        %v605 = vld [vmem:[%s2 + $0x478] sm:$0xff]
        %v606 = vld [vmem:[%s3] sm:$0x1]
        %v608 = vlaneseq
        %v609 = vshrl.u32 %v608, 7
        %v610 = vsub.s32 0, %v609
        %v611 = vrot.slane %v606, %v610
        %613 = vmatprep.subr.mxu0 0.0
        %614 = vmatpush1.msra.mxu0 %v477
        %615 = vmatprep.subr.mxu0 0.0
        %616 = vmatpush1.msra.mxu0 %v476
        %617 = vmatprep.subr.mxu0 0.0
        %618 = vmatpush1.msra.mxu0 %v475
        %619 = vmatprep.subr.mxu0 0.0
        %620 = vmatpush1.msra.mxu0 %v474
        %621 = vmatprep.subr.mxu0 0.0
        %622 = vmatpush1.msra.mxu0 %v473
        %623 = vmatprep.subr.mxu0 0.0
        %624 = vmatpush1.msra.mxu0 %v472
        %625 = vmatprep.subr.mxu0 0.0
        %626 = vmatpush1.msra.mxu0 %v471
        %627 = vmatprep.subr.mxu0 0.0
        %628 = vmatpush1.msra.mxu0 %v470
        %629 = vmatprep.subr.mxu0 0.0
        %630 = vmatpush1.msra.mxu0 %v469
        %631 = vmatprep.subr.mxu0 0.0
        %632 = vmatpush1.msra.mxu0 %v468
        %633 = vmatprep.subr.mxu0 0.0
        %634 = vmatpush1.msra.mxu0 %v467
        %635 = vmatprep.subr.mxu0 0.0
        %636 = vmatpush1.msra.mxu0 %v466
        %637 = vmatprep.subr.mxu0 0.0
        %638 = vmatpush1.msra.mxu0 %v465
        %639 = vmatprep.subr.mxu0 0.0
        %640 = vmatpush1.msra.mxu0 %v464
        %641 = vmatprep.subr.mxu0 0.0
        %642 = vmatpush1.msra.mxu0 %v463
        %643 = vmatprep.subr.mxu0 0.0
        %644 = vmatpush1.msra.mxu0 %v462
        %645 = vmatprep.subr.mxu0 0.0
        %646 = vmatpush2.msra.mxu0 %v493
        %647 = vmatprep.subr.mxu0 0.0
        %648 = vmatpush2.msra.mxu0 %v492
        %649 = vmatprep.subr.mxu0 0.0
        %650 = vmatpush2.msra.mxu0 %v491
        %651 = vmatprep.subr.mxu0 0.0
        %652 = vmatpush2.msra.mxu0 %v490
        %653 = vmatprep.subr.mxu0 0.0
        %654 = vmatpush2.msra.mxu0 %v489
        %655 = vmatprep.subr.mxu0 0.0
        %656 = vmatpush2.msra.mxu0 %v488
        %657 = vmatprep.subr.mxu0 0.0
        %658 = vmatpush2.msra.mxu0 %v487
        %659 = vmatprep.subr.mxu0 0.0
        %660 = vmatpush2.msra.mxu0 %v486
        %661 = vmatprep.subr.mxu0 0.0
        %662 = vmatpush2.msra.mxu0 %v485
        %663 = vmatprep.subr.mxu0 0.0
        %664 = vmatpush2.msra.mxu0 %v484
        %665 = vmatprep.subr.mxu0 0.0
        %666 = vmatpush2.msra.mxu0 %v483
        %667 = vmatprep.subr.mxu0 0.0
        %668 = vmatpush2.msra.mxu0 %v482
        %669 = vmatprep.subr.mxu0 0.0
        %670 = vmatpush2.msra.mxu0 %v481
        %671 = vmatprep.subr.mxu0 0.0
        %672 = vmatpush2.msra.mxu0 %v480
        %673 = vmatprep.subr.mxu0 0.0
        %674 = vmatpush2.msra.mxu0 %v479
        %675 = vmatprep.subr.mxu0 0.0
        %676 = vmatpush2.msra.mxu0 %v478
        %677 = vmatprep.mubr.f32.mxu0 %v309
        %678 = vmatmul.mubr.f32.gmra.mxu0 %v308
        %v679 = vpop.f32.mrf.mxu0
        %v680 = vadd.f32 %v611, %v679
        %v681 = vpop.f32.mrf.mxu0
        %682 = vmatprep.mubr.f32.mxu0 %v315
        %683 = vmatmul.mubr.f32.gmra.mxu0 %v314
        %v684 = vpop.f32.mrf.mxu0
        %v685 = vadd.f32 %v611, %v684
        %v686 = vpop.f32.mrf.mxu0
        %687 = vmatprep.mubr.f32.mxu0 %v321
        %688 = vmatmul.mubr.f32.gmra.mxu0 %v320
        %v689 = vpop.f32.mrf.mxu0
        %v690 = vadd.f32 %v611, %v689
        %v691 = vpop.f32.mrf.mxu0
        %692 = vmatprep.mubr.f32.mxu0 %v327
        %693 = vmatmul.mubr.f32.gmra.mxu0 %v326
        %v694 = vpop.f32.mrf.mxu0
        %v695 = vadd.f32 %v611, %v694
        %v696 = vpop.f32.mrf.mxu0
        %697 = vmatprep.mubr.f32.mxu0 %v333
        %698 = vmatmul.mubr.f32.gmra.mxu0 %v332
        %v699 = vpop.f32.mrf.mxu0
        %v700 = vadd.f32 %v611, %v699
        %v701 = vpop.f32.mrf.mxu0
        %702 = vmatprep.mubr.f32.mxu0 %v339
        %703 = vmatmul.mubr.f32.gmra.mxu0 %v338
        %v704 = vpop.f32.mrf.mxu0
        %v705 = vadd.f32 %v611, %v704
        %v706 = vpop.f32.mrf.mxu0
        %707 = vmatprep.mubr.f32.mxu0 %v345
        %708 = vmatmul.mubr.f32.gmra.mxu0 %v344
        %v709 = vpop.f32.mrf.mxu0
        %v710 = vadd.f32 %v611, %v709
        %v711 = vpop.f32.mrf.mxu0
        %712 = vmatprep.mubr.f32.mxu0 %v351
        %713 = vmatmul.mubr.f32.gmra.mxu0 %v350
        %v714 = vpop.f32.mrf.mxu0
        %v715 = vadd.f32 %v611, %v714
        %v716 = vpop.f32.mrf.mxu0
        %717 = vdwg.mxu0
        %718 = vmatprep.subr.mxu0 0.0
        %719 = vmatpush1.msra.mxu0 %v509
        %720 = vmatprep.subr.mxu0 0.0
        %721 = vmatpush1.msra.mxu0 %v508
        %722 = vmatprep.subr.mxu0 0.0
        %723 = vmatpush1.msra.mxu0 %v507
        %724 = vmatprep.subr.mxu0 0.0
        %725 = vmatpush1.msra.mxu0 %v506
        %726 = vmatprep.subr.mxu0 0.0
        %727 = vmatpush1.msra.mxu0 %v505
        %728 = vmatprep.subr.mxu0 0.0
        %729 = vmatpush1.msra.mxu0 %v504
        %730 = vmatprep.subr.mxu0 0.0
        %731 = vmatpush1.msra.mxu0 %v503
        %732 = vmatprep.subr.mxu0 0.0
        %733 = vmatpush1.msra.mxu0 %v502
        %734 = vmatprep.subr.mxu0 0.0
        %735 = vmatpush1.msra.mxu0 %v501
        %736 = vmatprep.subr.mxu0 0.0
        %737 = vmatpush1.msra.mxu0 %v500
        %738 = vmatprep.subr.mxu0 0.0
        %739 = vmatpush1.msra.mxu0 %v499
        %740 = vmatprep.subr.mxu0 0.0
        %741 = vmatpush1.msra.mxu0 %v498
        %742 = vmatprep.subr.mxu0 0.0
        %743 = vmatpush1.msra.mxu0 %v497
        %744 = vmatprep.subr.mxu0 0.0
        %745 = vmatpush1.msra.mxu0 %v496
        %746 = vmatprep.subr.mxu0 0.0
        %747 = vmatpush1.msra.mxu0 %v495
        %748 = vmatprep.subr.mxu0 0.0
        %749 = vmatpush1.msra.mxu0 %v494
        %750 = vmatprep.subr.mxu0 0.0
        %751 = vmatpush2.msra.mxu0 %v525
        %752 = vmatprep.subr.mxu0 0.0
        %753 = vmatpush2.msra.mxu0 %v524
        %754 = vmatprep.subr.mxu0 0.0
        %755 = vmatpush2.msra.mxu0 %v523
        %756 = vmatprep.subr.mxu0 0.0
        %757 = vmatpush2.msra.mxu0 %v522
        %758 = vmatprep.subr.mxu0 0.0
        %759 = vmatpush2.msra.mxu0 %v521
        %760 = vmatprep.subr.mxu0 0.0
        %761 = vmatpush2.msra.mxu0 %v520
        %762 = vmatprep.subr.mxu0 0.0
        %763 = vmatpush2.msra.mxu0 %v519
        %764 = vmatprep.subr.mxu0 0.0
        %765 = vmatpush2.msra.mxu0 %v518
        %766 = vmatprep.subr.mxu0 0.0
        %767 = vmatpush2.msra.mxu0 %v517
        %768 = vmatprep.subr.mxu0 0.0
        %769 = vmatpush2.msra.mxu0 %v516
        %770 = vmatprep.subr.mxu0 0.0
        %771 = vmatpush2.msra.mxu0 %v515
        %772 = vmatprep.subr.mxu0 0.0
        %773 = vmatpush2.msra.mxu0 %v514
        %774 = vmatprep.subr.mxu0 0.0
        %775 = vmatpush2.msra.mxu0 %v513
        %776 = vmatprep.subr.mxu0 0.0
        %777 = vmatpush2.msra.mxu0 %v512
        %778 = vmatprep.subr.mxu0 0.0
        %779 = vmatpush2.msra.mxu0 %v511
        %780 = vmatprep.subr.mxu0 0.0
        %781 = vmatpush2.msra.mxu0 %v510
        %782 = vmatprep.mubr.f32.mxu0 %v310
        %783 = vmatmul.mubr.f32.gmra.mxu0 %v378
        %v784 = vpop.f32.mrf.mxu0
        %v785 = vadd.f32 %v680, %v784
        %v786 = vpop.f32.mrf.mxu0
        %787 = vmatprep.mubr.f32.mxu0 %v316
        %788 = vmatmul.mubr.f32.gmra.mxu0 %v381
        %v789 = vpop.f32.mrf.mxu0
        %v790 = vadd.f32 %v685, %v789
        %v791 = vpop.f32.mrf.mxu0
        %792 = vmatprep.mubr.f32.mxu0 %v322
        %793 = vmatmul.mubr.f32.gmra.mxu0 %v384
        %v794 = vpop.f32.mrf.mxu0
        %v795 = vadd.f32 %v690, %v794
        %v796 = vpop.f32.mrf.mxu0
        %797 = vmatprep.mubr.f32.mxu0 %v328
        %798 = vmatmul.mubr.f32.gmra.mxu0 %v387
        %v799 = vpop.f32.mrf.mxu0
        %v800 = vadd.f32 %v695, %v799
        %v801 = vpop.f32.mrf.mxu0
        %802 = vmatprep.mubr.f32.mxu0 %v334
        %803 = vmatmul.mubr.f32.gmra.mxu0 %v390
        %v804 = vpop.f32.mrf.mxu0
        %v805 = vadd.f32 %v700, %v804
        %v806 = vpop.f32.mrf.mxu0
        %807 = vmatprep.mubr.f32.mxu0 %v340
        %808 = vmatmul.mubr.f32.gmra.mxu0 %v393
        %v809 = vpop.f32.mrf.mxu0
        %v810 = vadd.f32 %v705, %v809
        %v811 = vpop.f32.mrf.mxu0
        %812 = vmatprep.mubr.f32.mxu0 %v346
        %813 = vmatmul.mubr.f32.gmra.mxu0 %v396
        %v814 = vpop.f32.mrf.mxu0
        %v815 = vadd.f32 %v710, %v814
        %v816 = vpop.f32.mrf.mxu0
        %817 = vmatprep.mubr.f32.mxu0 %v352
        %818 = vmatmul.mubr.f32.gmra.mxu0 %v399
        %v819 = vpop.f32.mrf.mxu0
        %v820 = vadd.f32 %v715, %v819
        %v821 = vpop.f32.mrf.mxu0
        %822 = vdwg.mxu0
        %823 = vmatprep.subr.mxu0 0.0
        %824 = vmatpush1.msra.mxu0 %v541
        %825 = vmatprep.subr.mxu0 0.0
        %826 = vmatpush1.msra.mxu0 %v540
        %827 = vmatprep.subr.mxu0 0.0
        %828 = vmatpush1.msra.mxu0 %v539
        %829 = vmatprep.subr.mxu0 0.0
        %830 = vmatpush1.msra.mxu0 %v538
        %831 = vmatprep.subr.mxu0 0.0
        %832 = vmatpush1.msra.mxu0 %v537
        %833 = vmatprep.subr.mxu0 0.0
        %834 = vmatpush1.msra.mxu0 %v536
        %835 = vmatprep.subr.mxu0 0.0
        %836 = vmatpush1.msra.mxu0 %v535
        %837 = vmatprep.subr.mxu0 0.0
        %838 = vmatpush1.msra.mxu0 %v534
        %839 = vmatprep.subr.mxu0 0.0
        %840 = vmatpush1.msra.mxu0 %v533
        %841 = vmatprep.subr.mxu0 0.0
        %842 = vmatpush1.msra.mxu0 %v532
        %843 = vmatprep.subr.mxu0 0.0
        %844 = vmatpush1.msra.mxu0 %v531
        %845 = vmatprep.subr.mxu0 0.0
        %846 = vmatpush1.msra.mxu0 %v530
        %847 = vmatprep.subr.mxu0 0.0
        %848 = vmatpush1.msra.mxu0 %v529
        %849 = vmatprep.subr.mxu0 0.0
        %850 = vmatpush1.msra.mxu0 %v528
        %851 = vmatprep.subr.mxu0 0.0
        %852 = vmatpush1.msra.mxu0 %v527
        %853 = vmatprep.subr.mxu0 0.0
        %854 = vmatpush1.msra.mxu0 %v526
        %855 = vmatprep.subr.mxu0 0.0
        %856 = vmatpush2.msra.mxu0 %v557
        %857 = vmatprep.subr.mxu0 0.0
        %858 = vmatpush2.msra.mxu0 %v556
        %859 = vmatprep.subr.mxu0 0.0
        %860 = vmatpush2.msra.mxu0 %v555
        %861 = vmatprep.subr.mxu0 0.0
        %862 = vmatpush2.msra.mxu0 %v554
        %863 = vmatprep.subr.mxu0 0.0
        %864 = vmatpush2.msra.mxu0 %v553
        %865 = vmatprep.subr.mxu0 0.0
        %866 = vmatpush2.msra.mxu0 %v552
        %867 = vmatprep.subr.mxu0 0.0
        %868 = vmatpush2.msra.mxu0 %v551
        %869 = vmatprep.subr.mxu0 0.0
        %870 = vmatpush2.msra.mxu0 %v550
        %871 = vmatprep.subr.mxu0 0.0
        %872 = vmatpush2.msra.mxu0 %v549
        %873 = vmatprep.subr.mxu0 0.0
        %874 = vmatpush2.msra.mxu0 %v548
        %875 = vmatprep.subr.mxu0 0.0
        %876 = vmatpush2.msra.mxu0 %v547
        %877 = vmatprep.subr.mxu0 0.0
        %878 = vmatpush2.msra.mxu0 %v546
        %879 = vmatprep.subr.mxu0 0.0
        %880 = vmatpush2.msra.mxu0 %v545
        %881 = vmatprep.subr.mxu0 0.0
        %882 = vmatpush2.msra.mxu0 %v544
        %883 = vmatprep.subr.mxu0 0.0
        %884 = vmatpush2.msra.mxu0 %v543
        %885 = vmatprep.subr.mxu0 0.0
        %886 = vmatpush2.msra.mxu0 %v542
        %887 = vmatprep.mubr.f32.mxu0 %v426
        %888 = vmatmul.mubr.f32.gmra.mxu0 %v311
        %v889 = vpop.f32.mrf.mxu0
        %v890 = vadd.f32 %v785, %v889
        %v891 = vpop.f32.mrf.mxu0
        %892 = vmatprep.mubr.f32.mxu0 %v429
        %893 = vmatmul.mubr.f32.gmra.mxu0 %v317
        %v894 = vpop.f32.mrf.mxu0
        %v895 = vadd.f32 %v790, %v894
        %v896 = vpop.f32.mrf.mxu0
        %897 = vmatprep.mubr.f32.mxu0 %v432
        %898 = vmatmul.mubr.f32.gmra.mxu0 %v323
        %v899 = vpop.f32.mrf.mxu0
        %v900 = vadd.f32 %v795, %v899
        %v901 = vpop.f32.mrf.mxu0
        %902 = vmatprep.mubr.f32.mxu0 %v435
        %903 = vmatmul.mubr.f32.gmra.mxu0 %v329
        %v904 = vpop.f32.mrf.mxu0
        %v905 = vadd.f32 %v800, %v904
        %v906 = vpop.f32.mrf.mxu0
        %907 = vmatprep.mubr.f32.mxu0 %v438
        %908 = vmatmul.mubr.f32.gmra.mxu0 %v335
        %v909 = vpop.f32.mrf.mxu0
        %v910 = vadd.f32 %v805, %v909
        %v911 = vpop.f32.mrf.mxu0
        %912 = vmatprep.mubr.f32.mxu0 %v441
        %913 = vmatmul.mubr.f32.gmra.mxu0 %v341
        %v914 = vpop.f32.mrf.mxu0
        %v915 = vadd.f32 %v810, %v914
        %v916 = vpop.f32.mrf.mxu0
        %917 = vmatprep.mubr.f32.mxu0 %v444
        %918 = vmatmul.mubr.f32.gmra.mxu0 %v347
        %v919 = vpop.f32.mrf.mxu0
        %v920 = vadd.f32 %v815, %v919
        %v921 = vpop.f32.mrf.mxu0
        %922 = vmatprep.mubr.f32.mxu0 %v447
        %923 = vmatmul.mubr.f32.gmra.mxu0 %v353
        %v924 = vpop.f32.mrf.mxu0
        %v925 = vadd.f32 %v820, %v924
        %v926 = vpop.f32.mrf.mxu0
        %927 = vdwg.mxu0
        %928 = vmatprep.subr.mxu0 0.0
        %929 = vmatpush1.msra.mxu0 %v573
        %930 = vmatprep.subr.mxu0 0.0
        %931 = vmatpush1.msra.mxu0 %v572
        %932 = vmatprep.subr.mxu0 0.0
        %933 = vmatpush1.msra.mxu0 %v571
        %934 = vmatprep.subr.mxu0 0.0
        %935 = vmatpush1.msra.mxu0 %v570
        %936 = vmatprep.subr.mxu0 0.0
        %937 = vmatpush1.msra.mxu0 %v569
        %938 = vmatprep.subr.mxu0 0.0
        %939 = vmatpush1.msra.mxu0 %v568
        %940 = vmatprep.subr.mxu0 0.0
        %941 = vmatpush1.msra.mxu0 %v567
        %942 = vmatprep.subr.mxu0 0.0
        %943 = vmatpush1.msra.mxu0 %v566
        %944 = vmatprep.subr.mxu0 0.0
        %945 = vmatpush1.msra.mxu0 %v565
        %946 = vmatprep.subr.mxu0 0.0
        %947 = vmatpush1.msra.mxu0 %v564
        %948 = vmatprep.subr.mxu0 0.0
        %949 = vmatpush1.msra.mxu0 %v563
        %950 = vmatprep.subr.mxu0 0.0
        %951 = vmatpush1.msra.mxu0 %v562
        %952 = vmatprep.subr.mxu0 0.0
        %953 = vmatpush1.msra.mxu0 %v561
        %954 = vmatprep.subr.mxu0 0.0
        %955 = vmatpush1.msra.mxu0 %v560
        %956 = vmatprep.subr.mxu0 0.0
        %957 = vmatpush1.msra.mxu0 %v559
        %958 = vmatprep.subr.mxu0 0.0
        %959 = vmatpush1.msra.mxu0 %v558
        %960 = vmatprep.subr.mxu0 0.0
        %961 = vmatpush2.msra.mxu0 %v589
        %962 = vmatprep.subr.mxu0 0.0
        %963 = vmatpush2.msra.mxu0 %v588
        %964 = vmatprep.subr.mxu0 0.0
        %965 = vmatpush2.msra.mxu0 %v587
        %966 = vmatprep.subr.mxu0 0.0
        %967 = vmatpush2.msra.mxu0 %v586
        %968 = vmatprep.subr.mxu0 0.0
        %969 = vmatpush2.msra.mxu0 %v585
        %970 = vmatprep.subr.mxu0 0.0
        %971 = vmatpush2.msra.mxu0 %v584
        %972 = vmatprep.subr.mxu0 0.0
        %973 = vmatpush2.msra.mxu0 %v583
        %974 = vmatprep.subr.mxu0 0.0
        %975 = vmatpush2.msra.mxu0 %v582
        %976 = vmatprep.subr.mxu0 0.0
        %977 = vmatpush2.msra.mxu0 %v581
        %978 = vmatprep.subr.mxu0 0.0
        %979 = vmatpush2.msra.mxu0 %v580
        %980 = vmatprep.subr.mxu0 0.0
        %981 = vmatpush2.msra.mxu0 %v579
        %982 = vmatprep.subr.mxu0 0.0
        %983 = vmatpush2.msra.mxu0 %v578
        %984 = vmatprep.subr.mxu0 0.0
        %985 = vmatpush2.msra.mxu0 %v577
        %986 = vmatprep.subr.mxu0 0.0
        %987 = vmatpush2.msra.mxu0 %v576
        %988 = vmatprep.subr.mxu0 0.0
        %989 = vmatpush2.msra.mxu0 %v575
        %990 = vmatprep.subr.mxu0 0.0
        %991 = vmatpush2.msra.mxu0 %v574
        %992 = vmatprep.mubr.f32.mxu0 %v315
        %993 = vmatmul.mubr.f32.gmra.mxu0 %v314
        %v994 = vpop.f32.mrf.mxu0
        %v995 = vadd.f32 %v890, %v994
        %v996 = vpop.f32.mrf.mxu0
        %997 = vmatprep.mubr.f32.mxu0 %v321
        %998 = vmatmul.mubr.f32.gmra.mxu0 %v320
        %v999 = vpop.f32.mrf.mxu0
        %v1000 = vadd.f32 %v895, %v999
        %v1001 = vpop.f32.mrf.mxu0
        %1002 = vmatprep.mubr.f32.mxu0 %v327
        %1003 = vmatmul.mubr.f32.gmra.mxu0 %v326
        %v1004 = vpop.f32.mrf.mxu0
        %v1005 = vadd.f32 %v900, %v1004
        %v1006 = vpop.f32.mrf.mxu0
        %1007 = vmatprep.mubr.f32.mxu0 %v333
        %1008 = vmatmul.mubr.f32.gmra.mxu0 %v332
        %v1009 = vpop.f32.mrf.mxu0
        %v1010 = vadd.f32 %v905, %v1009
        %v1011 = vpop.f32.mrf.mxu0
        %1012 = vmatprep.mubr.f32.mxu0 %v339
        %1013 = vmatmul.mubr.f32.gmra.mxu0 %v338
        %v1014 = vpop.f32.mrf.mxu0
        %v1015 = vadd.f32 %v910, %v1014
        %v1016 = vpop.f32.mrf.mxu0
        %1017 = vmatprep.mubr.f32.mxu0 %v345
        %1018 = vmatmul.mubr.f32.gmra.mxu0 %v344
        %v1019 = vpop.f32.mrf.mxu0
        %v1020 = vadd.f32 %v915, %v1019
        %v1021 = vpop.f32.mrf.mxu0
        %1022 = vmatprep.mubr.f32.mxu0 %v351
        %1023 = vmatmul.mubr.f32.gmra.mxu0 %v350
        %v1024 = vpop.f32.mrf.mxu0
        %v1025 = vadd.f32 %v920, %v1024
        %v1026 = vpop.f32.mrf.mxu0
        %1027 = vmatprep.mubr.f32.mxu0 %v357
        %1028 = vmatmul.mubr.f32.gmra.mxu0 %v356
        %v1029 = vpop.f32.mrf.mxu0
        %v1030 = vadd.f32 %v925, %v1029
        %v1031 = vpop.f32.mrf.mxu0
        %1032 = vdwg.mxu0
        %1033 = vmatprep.subr.mxu0 0.0
        %1034 = vmatpush1.msra.mxu0 %v605
        %1035 = vmatprep.subr.mxu0 0.0
        %1036 = vmatpush1.msra.mxu0 %v604
        %1037 = vmatprep.subr.mxu0 0.0
        %1038 = vmatpush1.msra.mxu0 %v603
        %1039 = vmatprep.subr.mxu0 0.0
        %1040 = vmatpush1.msra.mxu0 %v602
        %1041 = vmatprep.subr.mxu0 0.0
        %1042 = vmatpush1.msra.mxu0 %v601
        %1043 = vmatprep.subr.mxu0 0.0
        %1044 = vmatpush1.msra.mxu0 %v600
        %1045 = vmatprep.subr.mxu0 0.0
        %1046 = vmatpush1.msra.mxu0 %v599
        %1047 = vmatprep.subr.mxu0 0.0
        %1048 = vmatpush1.msra.mxu0 %v598
        %1049 = vmatprep.subr.mxu0 0.0
        %1050 = vmatpush1.msra.mxu0 %v597
        %1051 = vmatprep.subr.mxu0 0.0
        %1052 = vmatpush1.msra.mxu0 %v596
        %1053 = vmatprep.subr.mxu0 0.0
        %1054 = vmatpush1.msra.mxu0 %v595
        %1055 = vmatprep.subr.mxu0 0.0
        %1056 = vmatpush1.msra.mxu0 %v594
        %1057 = vmatprep.subr.mxu0 0.0
        %1058 = vmatpush1.msra.mxu0 %v593
        %1059 = vmatprep.subr.mxu0 0.0
        %1060 = vmatpush1.msra.mxu0 %v592
        %1061 = vmatprep.subr.mxu0 0.0
        %1062 = vmatpush1.msra.mxu0 %v591
        %1063 = vmatprep.subr.mxu0 0.0
        %1064 = vmatpush1.msra.mxu0 %v590
        %1065 = vmatprep.subr.mxu0 0.0
        %1066 = vmatpush2.msra.mxu0 0.0
        %1067 = vmatprep.subr.mxu0 0.0
        %1068 = vmatpush2.msra.mxu0 0.0
        %1069 = vmatprep.subr.mxu0 0.0
        %1070 = vmatpush2.msra.mxu0 0.0
        %1071 = vmatprep.subr.mxu0 0.0
        %1072 = vmatpush2.msra.mxu0 0.0
        %1073 = vmatprep.subr.mxu0 0.0
        %1074 = vmatpush2.msra.mxu0 0.0
        %1075 = vmatprep.subr.mxu0 0.0
        %1076 = vmatpush2.msra.mxu0 0.0
        %1077 = vmatprep.subr.mxu0 0.0
        %1078 = vmatpush2.msra.mxu0 0.0
        %1079 = vmatprep.subr.mxu0 0.0
        %1080 = vmatpush2.msra.mxu0 0.0
        %1081 = vmatprep.subr.mxu0 0.0
        %1082 = vmatpush2.msra.mxu0 0.0
        %1083 = vmatprep.subr.mxu0 0.0
        %1084 = vmatpush2.msra.mxu0 0.0
        %1085 = vmatprep.subr.mxu0 0.0
        %1086 = vmatpush2.msra.mxu0 0.0
        %1087 = vmatprep.subr.mxu0 0.0
        %1088 = vmatpush2.msra.mxu0 0.0
        %1089 = vmatprep.subr.mxu0 0.0
        %1090 = vmatpush2.msra.mxu0 0.0
        %1091 = vmatprep.subr.mxu0 0.0
        %1092 = vmatpush2.msra.mxu0 0.0
        %1093 = vmatprep.subr.mxu0 0.0
        %1094 = vmatpush2.msra.mxu0 0.0
        %1095 = vmatprep.subr.mxu0 0.0
        %1096 = vmatpush2.msra.mxu0 0.0
        %1097 = vmatprep.mubr.f32.mxu0 0.0
        %1098 = vmatmul.mubr.f32.gmra.mxu0 %v381
        %v1099 = vpop.f32.mrf.mxu0
        %v1100 = vadd.f32 %v995, %v1099
        %v1101 = vpop.f32.mrf.mxu0
        %1102 = vmatprep.mubr.f32.mxu0 0.0
        %1103 = vmatmul.mubr.f32.gmra.mxu0 %v384
        %v1104 = vpop.f32.mrf.mxu0
        %v1105 = vadd.f32 %v1000, %v1104
        %v1106 = vpop.f32.mrf.mxu0
        %1107 = vmatprep.mubr.f32.mxu0 0.0
        %1108 = vmatmul.mubr.f32.gmra.mxu0 %v387
        %v1109 = vpop.f32.mrf.mxu0
        %v1110 = vadd.f32 %v1005, %v1109
        %v1111 = vpop.f32.mrf.mxu0
        %1112 = vmatprep.mubr.f32.mxu0 0.0
        %1113 = vmatmul.mubr.f32.gmra.mxu0 %v390
        %v1114 = vpop.f32.mrf.mxu0
        %v1115 = vadd.f32 %v1010, %v1114
        %v1116 = vpop.f32.mrf.mxu0
        %1117 = vmatprep.mubr.f32.mxu0 0.0
        %1118 = vmatmul.mubr.f32.gmra.mxu0 %v393
        %v1119 = vpop.f32.mrf.mxu0
        %v1120 = vadd.f32 %v1015, %v1119
        %v1121 = vpop.f32.mrf.mxu0
        %1122 = vmatprep.mubr.f32.mxu0 0.0
        %1123 = vmatmul.mubr.f32.gmra.mxu0 %v396
        %v1124 = vpop.f32.mrf.mxu0
        %v1125 = vadd.f32 %v1020, %v1124
        %v1126 = vpop.f32.mrf.mxu0
        %1127 = vmatprep.mubr.f32.mxu0 0.0
        %1128 = vmatmul.mubr.f32.gmra.mxu0 %v399
        %v1129 = vpop.f32.mrf.mxu0
        %v1130 = vadd.f32 %v1025, %v1129
        %v1131 = vpop.f32.mrf.mxu0
        %1132 = vmatprep.mubr.f32.mxu0 0.0
        %1133 = vmatmul.mubr.f32.gmra.mxu0 %v460
        %v1134 = vpop.f32.mrf.mxu0
        %v1135 = vadd.f32 %v1030, %v1134
        %v1136 = vpop.f32.mrf.mxu0
        %1137 = vdwg.mxu0
        %vm1138 = vcmp.ge.f32.partialorder %v1100, 0.0
        %vm1139 = vcmp.ge.f32.partialorder %v1105, 0.0
        %vm1140 = vcmp.ge.f32.partialorder %v1110, 0.0
        %vm1141 = vcmp.ge.f32.partialorder %v1115, 0.0
        %vm1142 = vcmp.ge.f32.partialorder %v1120, 0.0
        %vm1143 = vcmp.ge.f32.partialorder %v1125, 0.0
        %vm1144 = vcmp.ge.f32.partialorder %v1130, 0.0
        %vm1145 = vcmp.ge.f32.partialorder %v1135, 0.0
        %v1146 = vmul.f32 %v1100, 0.01
        %v1147 = vmul.f32 %v1105, 0.01
        %v1148 = vmul.f32 %v1110, 0.01
        %v1149 = vmul.f32 %v1115, 0.01
        %v1150 = vmul.f32 %v1120, 0.01
        %v1151 = vmul.f32 %v1125, 0.01
        %v1152 = vmul.f32 %v1130, 0.01
        %v1153 = vmul.f32 %v1135, 0.01
        %v1154 = vsel %vm1138, %v1100, %v1146
        %v1155 = vsel %vm1139, %v1105, %v1147
        %v1156 = vsel %vm1140, %v1110, %v1148
        %v1157 = vsel %vm1141, %v1115, %v1149
        %v1158 = vsel %vm1142, %v1120, %v1150
        %v1159 = vsel %vm1143, %v1125, %v1151
        %v1160 = vsel %vm1144, %v1130, %v1152
        %v1161 = vsel %vm1145, %v1135, %v1153
        %1162 = vst [vmem:[%s270] sm:$0xff] %v1154
        %1163 = vst [vmem:[%s270 + $0x8] sm:$0xff] %v1155
        %1164 = vst [vmem:[%s270 + $0x10] sm:$0xff] %v1156
        %1165 = vst [vmem:[%s270 + $0x18] sm:$0xff] %v1157
        %1166 = vst [vmem:[%s270 + $0x20] sm:$0xff] %v1158
        %1167 = vst [vmem:[%s270 + $0x28] sm:$0xff] %v1159
        %1168 = vst [vmem:[%s270 + $0x30] sm:$0xff] %v1160
        %1169 = vst [vmem:[%s270 + $0x38] sm:$0xff] %v1161
        %s1170 = sand.u32 %s142, 1
        %s1171 = scalar_lea.sflag [#allocation3], %s1170
        %s1172 = sand.u32 %s142, 1
        %s1173 = smul.addr %s1172, 64
        %s1174 = scalar_lea.vmem [#allocation2], %s1173
        // Predicated region
        $region37: #{downsampling_forward.1} parent=35 // pred_check
          %p1175 = pneg %p152
        $region38: #{downsampling_forward.1} parent=35 // pred_check_branch
          %1177 = sbr.rel (%p1175) target = $region40
        $region39: #{downsampling_forward.1} parent=35 // pred_region
          %s1178 = smul.u32 8, %s23
          %s1180 = ssub.s32 1024, 1024
          %1181 = vsyncadd %s1171, %s1180
          %s1182 = smul.addr %s22, 8
          %s1183 = sadd.s32 %s1178, %s1182
          %s1184 = smul.addr %s1183, 128
          %s1185 = scalar_lea.hbm %s4, %s1184
          %s1186 = sshll.u32 %s1174, 4
          %s1187 = int_to_ptr.vmem [resolvable:$true] %s1186
          %1192 = dma.vmem_to_hbm [thread:$0]  %s1187, 1024, %s1185, %s1171, 128, 128, 8
        $region40: #{downsampling_forward.1} parent=35 // pred_fallthru
          _
      $region36: #{downsampling_forward.1} parent=5 // pred_fallthru
        _
      %p1193 = scmp.le.s32.totalorder 2, %s13
      // Predicated region
      $region41: #{downsampling_forward.1} parent=5 // pred_check
        %p1194 = pneg %p1193
      $region42: #{downsampling_forward.1} parent=5 // pred_check_branch
        %1196 = sbr.rel (%p1194) target = $region44
      $region43: #{downsampling_forward.1} parent=5 // pred_region
        %s1197 = ssub.s32 %s13, 2
        // Predicated region
        $region45: #{downsampling_forward.1} parent=43 // pred_check
          %p1198 = pneg %p158
        $region46: #{downsampling_forward.1} parent=43 // pred_check_branch
          %1200 = sbr.rel (%p1198) target = $region48
        $region47: #{downsampling_forward.1} parent=43 // pred_region
          %s1201 = sand.u32 %s143, 1
          %s1202 = scalar_lea.sflag [#allocation3], %s1201
          %s1203 = sand.u32 %s143, 1
          %s1204 = smul.addr %s1203, 64
          %s1205 = scalar_lea.vmem [#allocation2], %s1204
          %1206 = dma.done %s1202, 1024
        $region48: #{downsampling_forward.1} parent=43 // pred_fallthru
          _
      $region44: #{downsampling_forward.1} parent=5 // pred_fallthru
        _
    $region6: #{downsampling_forward.1} parent=1 // loop_footer
      %s17 = sadd.s32 1, %s13
    $region7: #{downsampling_forward.1} parent=1 // loop_footer_branch
      %12 = sbr.rel target = $region3
    $region8: #{downsampling_forward.1} parent=1 // loop_exit
      _
    %1207 = vsyncpa [#allocation3], 1
    %s1208 = scalar_lea.sflag [#allocation3], 1
    %1209 = vsyncpa %s1208, 1

</llo_original>
